<compile_context>
chip_gen: v7x
topology: tpu7x:2x2x1
jax: 0.10.0
libtpu: 0.0.40
codegen_flags: <defaults>
</compile_context>

<pallas_src>
import functools
import math

import jax
import jax.numpy as jnp
from jax.experimental import pallas as pl
from jax.experimental.pallas import tpu as pltpu


# --------------------------------- the kernel --------------------------------

def _cldice_kernel(x_ref, acc_ref, *, Hp, H, Wp, W, half_rows, iters):
    """One grid step: a block of shape (2*B*Hp, PW).

    Rows [0, B*Hp) hold B pred planes (each an Hp-row band, P planes packed
    along lanes in Wp-wide strips); rows [B*Hp, 2*B*Hp) hold the matching true
    planes.  acc_ref is this split's (1, 8, PW) lane-partial accumulator.
    """
    step = pl.program_id(1)

    @pl.when(step == 0)
    def _():
        acc_ref[...] = jnp.zeros_like(acc_ref)

    x = x_ref[0].astype(jnp.float32)                    # (2*B*Hp, PW)
    RR, PW = x.shape

    # Per-plane boundary masks (modular => every Hp-row band / Wp-lane strip is
    # an independent plane; packed planes and the pred/true halves never leak).
    row = jax.lax.broadcasted_iota(jnp.int32, (RR, PW), 0) % Hp
    col = jax.lax.broadcasted_iota(jnp.int32, (RR, PW), 1) % Wp
    m_up = row == 0            # no valid neighbor above (within plane)
    m_down = row == H - 1      # no valid neighbor below (rows >= H are zero pad)
    m_left = col == 0          # no valid neighbor to the left (within strip)
    m_right = col == W - 1     # no valid neighbor to the right (cols >= W pad)

    inf = jnp.float32(jnp.inf)
    ninf = jnp.float32(-jnp.inf)

    def nbr(a, axis, direction, fill, mask):
        # result[i] = a[i - direction] along `axis`; out-of-plane filled.
        n = a.shape[axis]
        r = pltpu.roll(a, shift=direction % n, axis=axis)
        return jnp.where(mask, fill, r)

    def min3_h(a):
        return jnp.minimum(jnp.minimum(nbr(a, 0, 1, inf, m_up), a),
                           nbr(a, 0, -1, inf, m_down))

    def min3_w(a):
        return jnp.minimum(jnp.minimum(nbr(a, 1, 1, inf, m_left), a),
                           nbr(a, 1, -1, inf, m_right))

    def max3_h(a):
        return jnp.maximum(jnp.maximum(nbr(a, 0, 1, ninf, m_up), a),
                           nbr(a, 0, -1, ninf, m_down))

    def max3_w(a):
        return jnp.maximum(jnp.maximum(nbr(a, 1, 1, ninf, m_left), a),
                           nbr(a, 1, -1, ninf, m_right))

    def erode(a):
        # min(-maxpool(-a,(3,1),pad(1,0)), -maxpool(-a,(1,3),pad(0,1)))
        return jnp.minimum(min3_h(a), min3_w(a))

    def dilate(a):
        # maxpool(a,(3,3),pad(1,1)) -- separable
        return max3_w(max3_h(a))

    # soft_skel with erosion CSE: the erode inside soft_open(img) is exactly
    # the next iteration's img = soft_erode(img), so compute it once.
    img = x
    e = erode(img)
    skel = jnp.maximum(img - dilate(e), 0.0)
    for _ in range(iters):
        img = e
        e = erode(img)
        delta = jnp.maximum(img - dilate(e), 0.0)
        # delta - skel*delta == delta*(1-skel) >= 0 exactly for values in [0,1],
        # so the reference's outer relu is a no-op and is dropped.
        skel = skel + (delta - skel * delta)

    pred, true = x[:half_rows], x[half_rows:]
    skel_pred, skel_true = skel[:half_rows], skel[half_rows:]

    def rowsum(a):
        return jnp.sum(a, axis=0, keepdims=True)        # (1, PW) lane-partial

    partial = jnp.concatenate(
        [rowsum(true * pred),                 # 0: sum(y_true * y_pred)
         rowsum(pred),                        # 1: sum(y_pred)
         rowsum(true),                        # 2: sum(y_true)
         rowsum(skel_pred * true),            # 3: sum(skel_pred * y_true)
         rowsum(skel_pred),                   # 4: sum(skel_pred)
         rowsum(skel_true),                   # 5: sum(skel_true)
         jnp.zeros((2, PW), jnp.float32)],    # pad to 8 sublanes (unmasked store)
        axis=0)                                          # (8, PW)

    acc_ref[0] += partial


# --------------------------------- the wrapper --------------------------------

def _choose_packing(W, G):
    """Pick (Wp, P) so P*Wp is a multiple of 128 with minimal total padding."""
    best_key, sel = None, None
    for Wp in range(W, W + 129):
        P = 128 // math.gcd(Wp, 128)
        PW = P * Wp
        S = -(-G // P)
        cost = (S * PW) / float(G * W)       # padded elements per useful element
        key = (cost, PW, Wp)
        if best_key is None or key < best_key:
            best_key, sel = key, (Wp, P, PW, S)
    return sel


def soft_dice_cldice(y_pred, y_true, iter_=5, alpha=0.5, smooth=1.0,
                     block_slabs=None):
    N, C, H, W = y_pred.shape
    G = N * C
    dt = jnp.promote_types(y_pred.dtype, y_true.dtype)
    elem = jnp.dtype(dt).itemsize

    # ---- layout choices -------------------------------------------------------
    Hp = -(-H // 8) * 8                      # sublane-aligned plane height
    Wp, P, PW, S = _choose_packing(W, G)     # lane-dense packing (PW % 128 == 0)

    # ---- generation-aware VMEM budget & per-step slab count B -----------------
    try:
        vmem_cap = int(pltpu.get_tpu_info().vmem_capacity_bytes)
    except Exception:  # conservative fallback if the query is unavailable
        vmem_cap = 64 * 1024 * 1024
    budget = max(32 << 20, min(vmem_cap - (16 << 20), 100 << 20))

    try:
        kind = jax.devices()[0].device_kind.lower()
    except Exception:
        kind = ""
    two_tc = any(t in kind for t in ("v4", "v5p", "v7", "7x"))
    nsplit_pref = 2 if two_tc else 1

    slab_elems = 2 * Hp * PW                 # one pred+true slab pair
    # double-buffered input block + ~12 live f32 block-sized temporaries
    bytes_per_slab = slab_elems * (2 * elem + 12 * 4)
    B_cap = max(1, int((budget - (4 << 20)) // bytes_per_slab))
    B_pipe = max(1, -(-S // (2 * nsplit_pref)))   # keep a couple of steps per core
    B = B_cap if block_slabs is None else int(block_slabs)
    B = max(1, min(B, B_pipe if block_slabs is None else S, S))

    n_blocks = -(-S // B)
    nsplit = 2 if (two_tc and n_blocks >= 2) else 1
    steps = -(-n_blocks // nsplit)
    n_blocks_p = nsplit * steps

    block_elems = 2 * B * Hp * PW
    need = 2 * block_elems * elem + 12 * block_elems * 4 + (4 << 20)
    # TODO(synk): single planes too large for VMEM (H*PW on the order of 1M+
    # elements) would need halo tiling of the plane itself; here we only raise
    # the scoped limit toward the physical capacity.
    vmem_limit = int(max(32 << 20,
                         min(max(need, budget), max(vmem_cap - (8 << 20), 32 << 20))))

    # ---- pack planes: (G,H,W) -> (blocks, B*Hp, P*Wp) --------------------------
    def pack(a):
        a = a.reshape(G, H, W).astype(dt)
        a = jnp.pad(a, ((0, S * P - G), (0, Hp - H), (0, Wp - W)))
        # (S,P,Hp,Wp) -> (S,Hp,P,Wp) -> (S,Hp,P*Wp): plane p -> lanes [p*Wp,(p+1)*Wp)
        a = a.reshape(S, P, Hp, Wp).transpose(0, 2, 1, 3).reshape(S, Hp, PW)
        if n_blocks_p * B > S:
            a = jnp.pad(a, ((0, n_blocks_p * B - S), (0, 0), (0, 0)))
        return a.reshape(n_blocks_p, B * Hp, PW)

    # Per block: rows [0, B*Hp) are pred planes, rows [B*Hp, 2*B*Hp) true planes,
    # so one skeleton pass per step covers both.
    x = jnp.concatenate([pack(y_pred), pack(y_true)], axis=1)  # (blocks, 2*B*Hp, PW)

    acc = pl.pallas_call(
        functools.partial(_cldice_kernel, Hp=Hp, H=H, Wp=Wp, W=W,
                          half_rows=B * Hp, iters=iter_),
        out_shape=jax.ShapeDtypeStruct((nsplit, 8, PW), jnp.float32),
        grid_spec=pltpu.PrefetchScalarGridSpec(
            num_scalar_prefetch=0,
            grid=(nsplit, steps),
            in_specs=[pl.BlockSpec((1, 2 * B * Hp, PW),
                                   lambda c, s, steps=steps: (c * steps + s, 0, 0))],
            out_specs=pl.BlockSpec((1, 8, PW), lambda c, s: (c, 0, 0)),
        ),
        compiler_params=pltpu.CompilerParams(
            dimension_semantics=("parallel", "arbitrary"),
            vmem_limit_bytes=vmem_limit),
    )(x)

    # Final cross-lane / cross-split reduce + scalar combine (cheap, in JAX).
    sums = jnp.sum(acc, axis=(0, 2))                     # (8,), rows 6..7 are zero
    s_inter, s_pred, s_true, s_spt, s_sp, s_st = (sums[i] for i in range(6))

    # soft_dice (smooth hard-coded to 1, as in the reference soft_dice()).
    dice = 1.0 - (2.0 * s_inter + 1.0) / (s_true + s_pred + 1.0)
    # clDice (reference uses skel_pred*y_true in BOTH tprec and tsens).
    tprec = (s_spt + smooth) / (s_sp + smooth)
    tsens = (s_spt + smooth) / (s_st + smooth)
    cl_dice = 1.0 - 2.0 * (tprec * tsens) / (tprec + tsens)
    return (1.0 - alpha) * dice + alpha * cl_dice


# ------------------------------ pure-JAX reference ----------------------------

def _ref_erode(x):
    p1 = -jax.lax.reduce_window(-x, -jnp.inf, jax.lax.max, (1, 3, 1), (1, 1, 1), "SAME")
    p2 = -jax.lax.reduce_window(-x, -jnp.inf, jax.lax.max, (1, 1, 3), (1, 1, 1), "SAME")
    return jnp.minimum(p1, p2)


def _ref_dilate(x):
    return jax.lax.reduce_window(x, -jnp.inf, jax.lax.max, (1, 3, 3), (1, 1, 1), "SAME")


def _ref_skel(x, iters):
    img = x
    skel = jnp.maximum(img - _ref_dilate(_ref_erode(img)), 0.0)
    for _ in range(iters):
        img = _ref_erode(img)
        delta = jnp.maximum(img - _ref_dilate(_ref_erode(img)), 0.0)
        skel = skel + jnp.maximum(delta - skel * delta, 0.0)
    return skel


def _ref_loss(y_pred, y_true, iter_=5, alpha=0.5, smooth=1.0):
    N, C, H, W = y_pred.shape
    p = y_pred.reshape(N * C, H, W)
    t = y_true.reshape(N * C, H, W)
    dice = 1.0 - (2.0 * jnp.sum(t * p) + 1.0) / (jnp.sum(t) + jnp.sum(p) + 1.0)
    sp, st = _ref_skel(p, iter_), _ref_skel(t, iter_)
    tprec = (jnp.sum(sp * t) + smooth) / (jnp.sum(sp) + smooth)
    tsens = (jnp.sum(sp * t) + smooth) / (jnp.sum(st) + smooth)
    cl_dice = 1.0 - 2.0 * (tprec * tsens) / (tprec + tsens)
    return (1.0 - alpha) * dice + alpha * cl_dice


# ------------------------------------ main ------------------------------------

if __name__ == "__main__":
    key = jax.random.PRNGKey(0)
    k1, k2, k3, k4, k5, k6 = jax.random.split(key, 6)

    # 1) nominal small shapes
    N, C, H, W = 2, 4, 16, 16
    y_pred = jax.random.uniform(k1, (N, C, H, W), dtype=jnp.float32)           # soft probs
    y_true = (jax.random.uniform(k2, (N, C, H, W)) > 0.5).astype(jnp.float32)  # binary GT
    loss_fn = jax.jit(lambda p, t: soft_dice_cldice(p, t, iter_=5, alpha=0.5, smooth=1.0))
    loss = jax.block_until_ready(loss_fn(y_pred, y_true))
    ref = _ref_loss(y_pred, y_true, iter_=5, alpha=0.5, smooth=1.0)
    assert jnp.allclose(loss, ref, atol=1e-4, rtol=1e-4), (loss, ref)

    # 2) awkward shapes: H not a multiple of 8, W not lane-dense, G < P
    p2 = jax.random.uniform(k3, (1, 3, 10, 12), dtype=jnp.float32)
    t2 = (jax.random.uniform(k4, (1, 3, 10, 12)) > 0.5).astype(jnp.float32)
    l2 = jax.block_until_ready(jax.jit(
        lambda p, t: soft_dice_cldice(p, t, iter_=3, alpha=0.5, smooth=1.0))(p2, t2))
    r2 = _ref_loss(p2, t2, iter_=3, alpha=0.5, smooth=1.0)
    assert jnp.allclose(l2, r2, atol=1e-4, rtol=1e-4), (l2, r2)

    # 3) multi-step accumulation (and 2-way core split on megacore chips)
    p3 = jax.random.uniform(k5, (2, 8, 16, 16), dtype=jnp.float32)
    t3 = (jax.random.uniform(k6, (2, 8, 16, 16)) > 0.5).astype(jnp.float32)
    l3 = jax.block_until_ready(jax.jit(
        lambda p, t: soft_dice_cldice(p, t, iter_=2, alpha=0.5, smooth=1.0,
                                      block_slabs=1))(p3, t3))
    r3 = _ref_loss(p3, t3, iter_=2, alpha=0.5, smooth=1.0)
    assert jnp.allclose(l3, r3, atol=1e-4, rtol=1e-4), (l3, r3)

    print("KERNEL_OK")
</pallas_src>

<mosaic_0001>
module attributes {stable_mosaic.version = 11 : i64} {
  func.func @_cldice_kernel(%arg0: i32, %arg1: i32, %arg2: memref<1x32x128xf32, #tpu.memory_space<vmem>>, %arg3: memref<1x8x128xf32, #tpu.memory_space<vmem>>) attributes {dimension_semantics = [#tpu.dimension_semantics<parallel>, #tpu.dimension_semantics<arbitrary>], iteration_bounds = array<i64: 1, 1>, scalar_prefetch = 0 : i64, scratch_operands = 0 : i64, tpu.core_type = #tpu.core_type<tc>, window_params = [{transform_indices = @transform_0, window_bounds = array<i64: 1, 32, 128>}, {transform_indices = @transform_1, window_bounds = array<i64: 1, 8, 128>}]} {
    %c0_i32 = arith.constant 0 : i32
    %0 = arith.cmpi eq, %arg1, %c0_i32 : i32
    %1 = arith.extui %0 : i1 to i32
    %c0_i32_0 = arith.constant 0 : i32
    %2 = arith.cmpi ne, %1, %c0_i32_0 : i32
    scf.if %2 {
      %cst_128 = arith.constant 0.000000e+00 : f32
      %304 = vector.broadcast %cst_128 : f32 to vector<1x8x128xf32>
      %c0_129 = arith.constant 0 : index
      %c0_130 = arith.constant 0 : index
      %c0_131 = arith.constant 0 : index
      %305 = vector.load %arg3[%c0_129, %c0_130, %c0_131] : memref<1x8x128xf32, #tpu.memory_space<vmem>>, vector<1x8x128xf32>
      tpu.vector_store %arg3[%c0_129, %c0_130, %c0_131], %304 {strides = array<i32>} : memref<1x8x128xf32, #tpu.memory_space<vmem>>, vector<1x8x128xf32>,
    } else {
    }
    %c0 = arith.constant 0 : index
    %c0_1 = arith.constant 0 : index
    %c0_2 = arith.constant 0 : index
    %3 = vector.load %arg2[%c0, %c0_1, %c0_2] : memref<1x32x128xf32, #tpu.memory_space<vmem>>, vector<1x32x128xf32>
    %4 = vector.shape_cast %3 : vector<1x32x128xf32> to vector<32x128xf32>
    %5 = tpu.iota {dimensions = array<i32: 0>} : vector<32x128xi32>
    %c16_i32 = arith.constant 16 : i32
    %c0_i32_3 = arith.constant 0 : i32
    %6 = arith.cmpi eq, %c16_i32, %c0_i32_3 : i32
    %c1_i32 = arith.constant 1 : i32
    %7 = arith.select %6, %c1_i32, %c16_i32 : i32
    %8 = vector.broadcast %7 : i32 to vector<32x128xi32>
    %9 = arith.remsi %5, %8 : vector<32x128xi32>
    %c0_i32_4 = arith.constant 0 : i32
    %10 = vector.broadcast %c0_i32_4 : i32 to vector<32x128xi32>
    %11 = arith.cmpi ne, %9, %10 : vector<32x128xi32>
    %c0_i32_5 = arith.constant 0 : i32
    %12 = vector.broadcast %c0_i32_5 : i32 to vector<32x128xi32>
    %13 = arith.cmpi slt, %9, %12 : vector<32x128xi32>
    %c0_i32_6 = arith.constant 0 : i32
    %14 = arith.cmpi slt, %7, %c0_i32_6 : i32
    %15 = vector.broadcast %14 : i1 to vector<32x128xi1>
    %16 = vector.broadcast %15 : vector<32x128xi1> to vector<32x128xi1>
    %17 = arith.xori %13, %16 : vector<32x128xi1>
    %18 = arith.andi %17, %11 : vector<32x128xi1>
    %19 = vector.broadcast %7 : i32 to vector<32x128xi32>
    %20 = arith.addi %9, %19 : vector<32x128xi32>
    %21 = arith.select %18, %20, %9 : vector<32x128xi1>, vector<32x128xi32>
    %22 = tpu.iota {dimensions = array<i32: 1>} : vector<32x128xi32>
    %c16_i32_7 = arith.constant 16 : i32
    %c0_i32_8 = arith.constant 0 : i32
    %23 = arith.cmpi eq, %c16_i32_7, %c0_i32_8 : i32
    %c1_i32_9 = arith.constant 1 : i32
    %24 = arith.select %23, %c1_i32_9, %c16_i32_7 : i32
    %25 = vector.broadcast %24 : i32 to vector<32x128xi32>
    %26 = arith.remsi %22, %25 : vector<32x128xi32>
    %c0_i32_10 = arith.constant 0 : i32
    %27 = vector.broadcast %c0_i32_10 : i32 to vector<32x128xi32>
    %28 = arith.cmpi ne, %26, %27 : vector<32x128xi32>
    %c0_i32_11 = arith.constant 0 : i32
    %29 = vector.broadcast %c0_i32_11 : i32 to vector<32x128xi32>
    %30 = arith.cmpi slt, %26, %29 : vector<32x128xi32>
    %c0_i32_12 = arith.constant 0 : i32
    %31 = arith.cmpi slt, %24, %c0_i32_12 : i32
    %32 = vector.broadcast %31 : i1 to vector<32x128xi1>
    %33 = vector.broadcast %32 : vector<32x128xi1> to vector<32x128xi1>
    %34 = arith.xori %30, %33 : vector<32x128xi1>
    %35 = arith.andi %34, %28 : vector<32x128xi1>
    %36 = vector.broadcast %24 : i32 to vector<32x128xi32>
    %37 = arith.addi %26, %36 : vector<32x128xi32>
    %38 = arith.select %35, %37, %26 : vector<32x128xi1>, vector<32x128xi32>
    %c0_i32_13 = arith.constant 0 : i32
    %39 = vector.broadcast %c0_i32_13 : i32 to vector<32x128xi32>
    %40 = arith.cmpi eq, %21, %39 : vector<32x128xi32>
    %c15_i32 = arith.constant 15 : i32
    %41 = vector.broadcast %c15_i32 : i32 to vector<32x128xi32>
    %42 = arith.cmpi eq, %21, %41 : vector<32x128xi32>
    %c0_i32_14 = arith.constant 0 : i32
    %43 = vector.broadcast %c0_i32_14 : i32 to vector<32x128xi32>
    %44 = arith.cmpi eq, %38, %43 : vector<32x128xi32>
    %c15_i32_15 = arith.constant 15 : i32
    %45 = vector.broadcast %c15_i32_15 : i32 to vector<32x128xi32>
    %46 = arith.cmpi eq, %38, %45 : vector<32x128xi32>
    %c1_i32_16 = arith.constant 1 : i32
    %47 = tpu.dynamic_rotate %4 by %c1_i32_16 dim 0 : vector<32x128xf32>, i32 -> vector<32x128xf32>
    %cst = arith.constant 0x7F800000 : f32
    %48 = vector.broadcast %cst : f32 to vector<32x128xf32>
    %49 = arith.select %40, %48, %47 : vector<32x128xi1>, vector<32x128xf32>
    %50 = arith.minimumf %49, %4 : vector<32x128xf32>
    %c31_i32 = arith.constant 31 : i32
    %51 = tpu.dynamic_rotate %4 by %c31_i32 dim 0 : vector<32x128xf32>, i32 -> vector<32x128xf32>
    %cst_17 = arith.constant 0x7F800000 : f32
    %52 = vector.broadcast %cst_17 : f32 to vector<32x128xf32>
    %53 = arith.select %42, %52, %51 : vector<32x128xi1>, vector<32x128xf32>
    %54 = arith.minimumf %50, %53 : vector<32x128xf32>
    %c1_i32_18 = arith.constant 1 : i32
    %55 = tpu.dynamic_rotate %4 by %c1_i32_18 dim 1 : vector<32x128xf32>, i32 -> vector<32x128xf32>
    %cst_19 = arith.constant 0x7F800000 : f32
    %56 = vector.broadcast %cst_19 : f32 to vector<32x128xf32>
    %57 = arith.select %44, %56, %55 : vector<32x128xi1>, vector<32x128xf32>
    %58 = arith.minimumf %57, %4 : vector<32x128xf32>
    %c127_i32 = arith.constant 127 : i32
    %59 = tpu.dynamic_rotate %4 by %c127_i32 dim 1 : vector<32x128xf32>, i32 -> vector<32x128xf32>
    %cst_20 = arith.constant 0x7F800000 : f32
    %60 = vector.broadcast %cst_20 : f32 to vector<32x128xf32>
    %61 = arith.select %46, %60, %59 : vector<32x128xi1>, vector<32x128xf32>
    %62 = arith.minimumf %58, %61 : vector<32x128xf32>
    %63 = arith.minimumf %54, %62 : vector<32x128xf32>
    %c1_i32_21 = arith.constant 1 : i32
    %64 = tpu.dynamic_rotate %63 by %c1_i32_21 dim 0 : vector<32x128xf32>, i32 -> vector<32x128xf32>
    %cst_22 = arith.constant 0xFF800000 : f32
    %65 = vector.broadcast %cst_22 : f32 to vector<32x128xf32>
    %66 = arith.select %40, %65, %64 : vector<32x128xi1>, vector<32x128xf32>
    %67 = arith.maximumf %66, %63 : vector<32x128xf32>
    %c31_i32_23 = arith.constant 31 : i32
    %68 = tpu.dynamic_rotate %63 by %c31_i32_23 dim 0 : vector<32x128xf32>, i32 -> vector<32x128xf32>
    %cst_24 = arith.constant 0xFF800000 : f32
    %69 = vector.broadcast %cst_24 : f32 to vector<32x128xf32>
    %70 = arith.select %42, %69, %68 : vector<32x128xi1>, vector<32x128xf32>
    %71 = arith.maximumf %67, %70 : vector<32x128xf32>
    %c1_i32_25 = arith.constant 1 : i32
    %72 = tpu.dynamic_rotate %71 by %c1_i32_25 dim 1 : vector<32x128xf32>, i32 -> vector<32x128xf32>
    %cst_26 = arith.constant 0xFF800000 : f32
    %73 = vector.broadcast %cst_26 : f32 to vector<32x128xf32>
    %74 = arith.select %44, %73, %72 : vector<32x128xi1>, vector<32x128xf32>
    %75 = arith.maximumf %74, %71 : vector<32x128xf32>
    %c127_i32_27 = arith.constant 127 : i32
    %76 = tpu.dynamic_rotate %71 by %c127_i32_27 dim 1 : vector<32x128xf32>, i32 -> vector<32x128xf32>
    %cst_28 = arith.constant 0xFF800000 : f32
    %77 = vector.broadcast %cst_28 : f32 to vector<32x128xf32>
    %78 = arith.select %46, %77, %76 : vector<32x128xi1>, vector<32x128xf32>
    %79 = arith.maximumf %75, %78 : vector<32x128xf32>
    %80 = arith.subf %4, %79 : vector<32x128xf32>
    %cst_29 = arith.constant 0.000000e+00 : f32
    %81 = vector.broadcast %cst_29 : f32 to vector<32x128xf32>
    %82 = arith.maximumf %80, %81 : vector<32x128xf32>
    %c1_i32_30 = arith.constant 1 : i32
    %83 = tpu.dynamic_rotate %63 by %c1_i32_30 dim 0 : vector<32x128xf32>, i32 -> vector<32x128xf32>
    %cst_31 = arith.constant 0x7F800000 : f32
    %84 = vector.broadcast %cst_31 : f32 to vector<32x128xf32>
    %85 = arith.select %40, %84, %83 : vector<32x128xi1>, vector<32x128xf32>
    %86 = arith.minimumf %85, %63 : vector<32x128xf32>
    %c31_i32_32 = arith.constant 31 : i32
    %87 = tpu.dynamic_rotate %63 by %c31_i32_32 dim 0 : vector<32x128xf32>, i32 -> vector<32x128xf32>
    %cst_33 = arith.constant 0x7F800000 : f32
    %88 = vector.broadcast %cst_33 : f32 to vector<32x128xf32>
    %89 = arith.select %42, %88, %87 : vector<32x128xi1>, vector<32x128xf32>
    %90 = arith.minimumf %86, %89 : vector<32x128xf32>
    %c1_i32_34 = arith.constant 1 : i32
    %91 = tpu.dynamic_rotate %63 by %c1_i32_34 dim 1 : vector<32x128xf32>, i32 -> vector<32x128xf32>
    %cst_35 = arith.constant 0x7F800000 : f32
    %92 = vector.broadcast %cst_35 : f32 to vector<32x128xf32>
    %93 = arith.select %44, %92, %91 : vector<32x128xi1>, vector<32x128xf32>
    %94 = arith.minimumf %93, %63 : vector<32x128xf32>
    %c127_i32_36 = arith.constant 127 : i32
    %95 = tpu.dynamic_rotate %63 by %c127_i32_36 dim 1 : vector<32x128xf32>, i32 -> vector<32x128xf32>
    %cst_37 = arith.constant 0x7F800000 : f32
    %96 = vector.broadcast %cst_37 : f32 to vector<32x128xf32>
    %97 = arith.select %46, %96, %95 : vector<32x128xi1>, vector<32x128xf32>
    %98 = arith.minimumf %94, %97 : vector<32x128xf32>
    %99 = arith.minimumf %90, %98 : vector<32x128xf32>
    %c1_i32_38 = arith.constant 1 : i32
    %100 = tpu.dynamic_rotate %99 by %c1_i32_38 dim 0 : vector<32x128xf32>, i32 -> vector<32x128xf32>
    %cst_39 = arith.constant 0xFF800000 : f32
    %101 = vector.broadcast %cst_39 : f32 to vector<32x128xf32>
    %102 = arith.select %40, %101, %100 : vector<32x128xi1>, vector<32x128xf32>
    %103 = arith.maximumf %102, %99 : vector<32x128xf32>
    %c31_i32_40 = arith.constant 31 : i32
    %104 = tpu.dynamic_rotate %99 by %c31_i32_40 dim 0 : vector<32x128xf32>, i32 -> vector<32x128xf32>
    %cst_41 = arith.constant 0xFF800000 : f32
    %105 = vector.broadcast %cst_41 : f32 to vector<32x128xf32>
    %106 = arith.select %42, %105, %104 : vector<32x128xi1>, vector<32x128xf32>
    %107 = arith.maximumf %103, %106 : vector<32x128xf32>
    %c1_i32_42 = arith.constant 1 : i32
    %108 = tpu.dynamic_rotate %107 by %c1_i32_42 dim 1 : vector<32x128xf32>, i32 -> vector<32x128xf32>
    %cst_43 = arith.constant 0xFF800000 : f32
    %109 = vector.broadcast %cst_43 : f32 to vector<32x128xf32>
    %110 = arith.select %44, %109, %108 : vector<32x128xi1>, vector<32x128xf32>
    %111 = arith.maximumf %110, %107 : vector<32x128xf32>
    %c127_i32_44 = arith.constant 127 : i32
    %112 = tpu.dynamic_rotate %107 by %c127_i32_44 dim 1 : vector<32x128xf32>, i32 -> vector<32x128xf32>
    %cst_45 = arith.constant 0xFF800000 : f32
    %113 = vector.broadcast %cst_45 : f32 to vector<32x128xf32>
    %114 = arith.select %46, %113, %112 : vector<32x128xi1>, vector<32x128xf32>
    %115 = arith.maximumf %111, %114 : vector<32x128xf32>
    %116 = arith.subf %63, %115 : vector<32x128xf32>
    %cst_46 = arith.constant 0.000000e+00 : f32
    %117 = vector.broadcast %cst_46 : f32 to vector<32x128xf32>
    %118 = arith.maximumf %116, %117 : vector<32x128xf32>
    %119 = arith.mulf %82, %118 : vector<32x128xf32>
    %120 = arith.subf %118, %119 : vector<32x128xf32>
    %121 = arith.addf %82, %120 : vector<32x128xf32>
    %c1_i32_47 = arith.constant 1 : i32
    %122 = tpu.dynamic_rotate %99 by %c1_i32_47 dim 0 : vector<32x128xf32>, i32 -> vector<32x128xf32>
    %cst_48 = arith.constant 0x7F800000 : f32
    %123 = vector.broadcast %cst_48 : f32 to vector<32x128xf32>
    %124 = arith.select %40, %123, %122 : vector<32x128xi1>, vector<32x128xf32>
    %125 = arith.minimumf %124, %99 : vector<32x128xf32>
    %c31_i32_49 = arith.constant 31 : i32
    %126 = tpu.dynamic_rotate %99 by %c31_i32_49 dim 0 : vector<32x128xf32>, i32 -> vector<32x128xf32>
    %cst_50 = arith.constant 0x7F800000 : f32
    %127 = vector.broadcast %cst_50 : f32 to vector<32x128xf32>
    %128 = arith.select %42, %127, %126 : vector<32x128xi1>, vector<32x128xf32>
    %129 = arith.minimumf %125, %128 : vector<32x128xf32>
    %c1_i32_51 = arith.constant 1 : i32
    %130 = tpu.dynamic_rotate %99 by %c1_i32_51 dim 1 : vector<32x128xf32>, i32 -> vector<32x128xf32>
    %cst_52 = arith.constant 0x7F800000 : f32
    %131 = vector.broadcast %cst_52 : f32 to vector<32x128xf32>
    %132 = arith.select %44, %131, %130 : vector<32x128xi1>, vector<32x128xf32>
    %133 = arith.minimumf %132, %99 : vector<32x128xf32>
    %c127_i32_53 = arith.constant 127 : i32
    %134 = tpu.dynamic_rotate %99 by %c127_i32_53 dim 1 : vector<32x128xf32>, i32 -> vector<32x128xf32>
    %cst_54 = arith.constant 0x7F800000 : f32
    %135 = vector.broadcast %cst_54 : f32 to vector<32x128xf32>
    %136 = arith.select %46, %135, %134 : vector<32x128xi1>, vector<32x128xf32>
    %137 = arith.minimumf %133, %136 : vector<32x128xf32>
    %138 = arith.minimumf %129, %137 : vector<32x128xf32>
    %c1_i32_55 = arith.constant 1 : i32
    %139 = tpu.dynamic_rotate %138 by %c1_i32_55 dim 0 : vector<32x128xf32>, i32 -> vector<32x128xf32>
    %cst_56 = arith.constant 0xFF800000 : f32
    %140 = vector.broadcast %cst_56 : f32 to vector<32x128xf32>
    %141 = arith.select %40, %140, %139 : vector<32x128xi1>, vector<32x128xf32>
    %142 = arith.maximumf %141, %138 : vector<32x128xf32>
    %c31_i32_57 = arith.constant 31 : i32
    %143 = tpu.dynamic_rotate %138 by %c31_i32_57 dim 0 : vector<32x128xf32>, i32 -> vector<32x128xf32>
    %cst_58 = arith.constant 0xFF800000 : f32
    %144 = vector.broadcast %cst_58 : f32 to vector<32x128xf32>
    %145 = arith.select %42, %144, %143 : vector<32x128xi1>, vector<32x128xf32>
    %146 = arith.maximumf %142, %145 : vector<32x128xf32>
    %c1_i32_59 = arith.constant 1 : i32
    %147 = tpu.dynamic_rotate %146 by %c1_i32_59 dim 1 : vector<32x128xf32>, i32 -> vector<32x128xf32>
    %cst_60 = arith.constant 0xFF800000 : f32
    %148 = vector.broadcast %cst_60 : f32 to vector<32x128xf32>
    %149 = arith.select %44, %148, %147 : vector<32x128xi1>, vector<32x128xf32>
    %150 = arith.maximumf %149, %146 : vector<32x128xf32>
    %c127_i32_61 = arith.constant 127 : i32
    %151 = tpu.dynamic_rotate %146 by %c127_i32_61 dim 1 : vector<32x128xf32>, i32 -> vector<32x128xf32>
    %cst_62 = arith.constant 0xFF800000 : f32
    %152 = vector.broadcast %cst_62 : f32 to vector<32x128xf32>
    %153 = arith.select %46, %152, %151 : vector<32x128xi1>, vector<32x128xf32>
    %154 = arith.maximumf %150, %153 : vector<32x128xf32>
    %155 = arith.subf %99, %154 : vector<32x128xf32>
    %cst_63 = arith.constant 0.000000e+00 : f32
    %156 = vector.broadcast %cst_63 : f32 to vector<32x128xf32>
    %157 = arith.maximumf %155, %156 : vector<32x128xf32>
    %158 = arith.mulf %121, %157 : vector<32x128xf32>
    %159 = arith.subf %157, %158 : vector<32x128xf32>
    %160 = arith.addf %121, %159 : vector<32x128xf32>
    %c1_i32_64 = arith.constant 1 : i32
    %161 = tpu.dynamic_rotate %138 by %c1_i32_64 dim 0 : vector<32x128xf32>, i32 -> vector<32x128xf32>
    %cst_65 = arith.constant 0x7F800000 : f32
    %162 = vector.broadcast %cst_65 : f32 to vector<32x128xf32>
    %163 = arith.select %40, %162, %161 : vector<32x128xi1>, vector<32x128xf32>
    %164 = arith.minimumf %163, %138 : vector<32x128xf32>
    %c31_i32_66 = arith.constant 31 : i32
    %165 = tpu.dynamic_rotate %138 by %c31_i32_66 dim 0 : vector<32x128xf32>, i32 -> vector<32x128xf32>
    %cst_67 = arith.constant 0x7F800000 : f32
    %166 = vector.broadcast %cst_67 : f32 to vector<32x128xf32>
    %167 = arith.select %42, %166, %165 : vector<32x128xi1>, vector<32x128xf32>
    %168 = arith.minimumf %164, %167 : vector<32x128xf32>
    %c1_i32_68 = arith.constant 1 : i32
    %169 = tpu.dynamic_rotate %138 by %c1_i32_68 dim 1 : vector<32x128xf32>, i32 -> vector<32x128xf32>
    %cst_69 = arith.constant 0x7F800000 : f32
    %170 = vector.broadcast %cst_69 : f32 to vector<32x128xf32>
    %171 = arith.select %44, %170, %169 : vector<32x128xi1>, vector<32x128xf32>
    %172 = arith.minimumf %171, %138 : vector<32x128xf32>
    %c127_i32_70 = arith.constant 127 : i32
    %173 = tpu.dynamic_rotate %138 by %c127_i32_70 dim 1 : vector<32x128xf32>, i32 -> vector<32x128xf32>
    %cst_71 = arith.constant 0x7F800000 : f32
    %174 = vector.broadcast %cst_71 : f32 to vector<32x128xf32>
    %175 = arith.select %46, %174, %173 : vector<32x128xi1>, vector<32x128xf32>
    %176 = arith.minimumf %172, %175 : vector<32x128xf32>
    %177 = arith.minimumf %168, %176 : vector<32x128xf32>
    %c1_i32_72 = arith.constant 1 : i32
    %178 = tpu.dynamic_rotate %177 by %c1_i32_72 dim 0 : vector<32x128xf32>, i32 -> vector<32x128xf32>
    %cst_73 = arith.constant 0xFF800000 : f32
    %179 = vector.broadcast %cst_73 : f32 to vector<32x128xf32>
    %180 = arith.select %40, %179, %178 : vector<32x128xi1>, vector<32x128xf32>
    %181 = arith.maximumf %180, %177 : vector<32x128xf32>
    %c31_i32_74 = arith.constant 31 : i32
    %182 = tpu.dynamic_rotate %177 by %c31_i32_74 dim 0 : vector<32x128xf32>, i32 -> vector<32x128xf32>
    %cst_75 = arith.constant 0xFF800000 : f32
    %183 = vector.broadcast %cst_75 : f32 to vector<32x128xf32>
    %184 = arith.select %42, %183, %182 : vector<32x128xi1>, vector<32x128xf32>
    %185 = arith.maximumf %181, %184 : vector<32x128xf32>
    %c1_i32_76 = arith.constant 1 : i32
    %186 = tpu.dynamic_rotate %185 by %c1_i32_76 dim 1 : vector<32x128xf32>, i32 -> vector<32x128xf32>
    %cst_77 = arith.constant 0xFF800000 : f32
    %187 = vector.broadcast %cst_77 : f32 to vector<32x128xf32>
    %188 = arith.select %44, %187, %186 : vector<32x128xi1>, vector<32x128xf32>
    %189 = arith.maximumf %188, %185 : vector<32x128xf32>
    %c127_i32_78 = arith.constant 127 : i32
    %190 = tpu.dynamic_rotate %185 by %c127_i32_78 dim 1 : vector<32x128xf32>, i32 -> vector<32x128xf32>
    %cst_79 = arith.constant 0xFF800000 : f32
    %191 = vector.broadcast %cst_79 : f32 to vector<32x128xf32>
    %192 = arith.select %46, %191, %190 : vector<32x128xi1>, vector<32x128xf32>
    %193 = arith.maximumf %189, %192 : vector<32x128xf32>
    %194 = arith.subf %138, %193 : vector<32x128xf32>
    %cst_80 = arith.constant 0.000000e+00 : f32
    %195 = vector.broadcast %cst_80 : f32 to vector<32x128xf32>
    %196 = arith.maximumf %194, %195 : vector<32x128xf32>
    %197 = arith.mulf %160, %196 : vector<32x128xf32>
    %198 = arith.subf %196, %197 : vector<32x128xf32>
    %199 = arith.addf %160, %198 : vector<32x128xf32>
    %c1_i32_81 = arith.constant 1 : i32
    %200 = tpu.dynamic_rotate %177 by %c1_i32_81 dim 0 : vector<32x128xf32>, i32 -> vector<32x128xf32>
    %cst_82 = arith.constant 0x7F800000 : f32
    %201 = vector.broadcast %cst_82 : f32 to vector<32x128xf32>
    %202 = arith.select %40, %201, %200 : vector<32x128xi1>, vector<32x128xf32>
    %203 = arith.minimumf %202, %177 : vector<32x128xf32>
    %c31_i32_83 = arith.constant 31 : i32
    %204 = tpu.dynamic_rotate %177 by %c31_i32_83 dim 0 : vector<32x128xf32>, i32 -> vector<32x128xf32>
    %cst_84 = arith.constant 0x7F800000 : f32
    %205 = vector.broadcast %cst_84 : f32 to vector<32x128xf32>
    %206 = arith.select %42, %205, %204 : vector<32x128xi1>, vector<32x128xf32>
    %207 = arith.minimumf %203, %206 : vector<32x128xf32>
    %c1_i32_85 = arith.constant 1 : i32
    %208 = tpu.dynamic_rotate %177 by %c1_i32_85 dim 1 : vector<32x128xf32>, i32 -> vector<32x128xf32>
    %cst_86 = arith.constant 0x7F800000 : f32
    %209 = vector.broadcast %cst_86 : f32 to vector<32x128xf32>
    %210 = arith.select %44, %209, %208 : vector<32x128xi1>, vector<32x128xf32>
    %211 = arith.minimumf %210, %177 : vector<32x128xf32>
    %c127_i32_87 = arith.constant 127 : i32
    %212 = tpu.dynamic_rotate %177 by %c127_i32_87 dim 1 : vector<32x128xf32>, i32 -> vector<32x128xf32>
    %cst_88 = arith.constant 0x7F800000 : f32
    %213 = vector.broadcast %cst_88 : f32 to vector<32x128xf32>
    %214 = arith.select %46, %213, %212 : vector<32x128xi1>, vector<32x128xf32>
    %215 = arith.minimumf %211, %214 : vector<32x128xf32>
    %216 = arith.minimumf %207, %215 : vector<32x128xf32>
    %c1_i32_89 = arith.constant 1 : i32
    %217 = tpu.dynamic_rotate %216 by %c1_i32_89 dim 0 : vector<32x128xf32>, i32 -> vector<32x128xf32>
    %cst_90 = arith.constant 0xFF800000 : f32
    %218 = vector.broadcast %cst_90 : f32 to vector<32x128xf32>
    %219 = arith.select %40, %218, %217 : vector<32x128xi1>, vector<32x128xf32>
    %220 = arith.maximumf %219, %216 : vector<32x128xf32>
    %c31_i32_91 = arith.constant 31 : i32
    %221 = tpu.dynamic_rotate %216 by %c31_i32_91 dim 0 : vector<32x128xf32>, i32 -> vector<32x128xf32>
    %cst_92 = arith.constant 0xFF800000 : f32
    %222 = vector.broadcast %cst_92 : f32 to vector<32x128xf32>
    %223 = arith.select %42, %222, %221 : vector<32x128xi1>, vector<32x128xf32>
    %224 = arith.maximumf %220, %223 : vector<32x128xf32>
    %c1_i32_93 = arith.constant 1 : i32
    %225 = tpu.dynamic_rotate %224 by %c1_i32_93 dim 1 : vector<32x128xf32>, i32 -> vector<32x128xf32>
    %cst_94 = arith.constant 0xFF800000 : f32
    %226 = vector.broadcast %cst_94 : f32 to vector<32x128xf32>
    %227 = arith.select %44, %226, %225 : vector<32x128xi1>, vector<32x128xf32>
    %228 = arith.maximumf %227, %224 : vector<32x128xf32>
    %c127_i32_95 = arith.constant 127 : i32
    %229 = tpu.dynamic_rotate %224 by %c127_i32_95 dim 1 : vector<32x128xf32>, i32 -> vector<32x128xf32>
    %cst_96 = arith.constant 0xFF800000 : f32
    %230 = vector.broadcast %cst_96 : f32 to vector<32x128xf32>
    %231 = arith.select %46, %230, %229 : vector<32x128xi1>, vector<32x128xf32>
    %232 = arith.maximumf %228, %231 : vector<32x128xf32>
    %233 = arith.subf %177, %232 : vector<32x128xf32>
    %cst_97 = arith.constant 0.000000e+00 : f32
    %234 = vector.broadcast %cst_97 : f32 to vector<32x128xf32>
    %235 = arith.maximumf %233, %234 : vector<32x128xf32>
    %236 = arith.mulf %199, %235 : vector<32x128xf32>
    %237 = arith.subf %235, %236 : vector<32x128xf32>
    %238 = arith.addf %199, %237 : vector<32x128xf32>
    %c1_i32_98 = arith.constant 1 : i32
    %239 = tpu.dynamic_rotate %216 by %c1_i32_98 dim 0 : vector<32x128xf32>, i32 -> vector<32x128xf32>
    %cst_99 = arith.constant 0x7F800000 : f32
    %240 = vector.broadcast %cst_99 : f32 to vector<32x128xf32>
    %241 = arith.select %40, %240, %239 : vector<32x128xi1>, vector<32x128xf32>
    %242 = arith.minimumf %241, %216 : vector<32x128xf32>
    %c31_i32_100 = arith.constant 31 : i32
    %243 = tpu.dynamic_rotate %216 by %c31_i32_100 dim 0 : vector<32x128xf32>, i32 -> vector<32x128xf32>
    %cst_101 = arith.constant 0x7F800000 : f32
    %244 = vector.broadcast %cst_101 : f32 to vector<32x128xf32>
    %245 = arith.select %42, %244, %243 : vector<32x128xi1>, vector<32x128xf32>
    %246 = arith.minimumf %242, %245 : vector<32x128xf32>
    %c1_i32_102 = arith.constant 1 : i32
    %247 = tpu.dynamic_rotate %216 by %c1_i32_102 dim 1 : vector<32x128xf32>, i32 -> vector<32x128xf32>
    %cst_103 = arith.constant 0x7F800000 : f32
    %248 = vector.broadcast %cst_103 : f32 to vector<32x128xf32>
    %249 = arith.select %44, %248, %247 : vector<32x128xi1>, vector<32x128xf32>
    %250 = arith.minimumf %249, %216 : vector<32x128xf32>
    %c127_i32_104 = arith.constant 127 : i32
    %251 = tpu.dynamic_rotate %216 by %c127_i32_104 dim 1 : vector<32x128xf32>, i32 -> vector<32x128xf32>
    %cst_105 = arith.constant 0x7F800000 : f32
    %252 = vector.broadcast %cst_105 : f32 to vector<32x128xf32>
    %253 = arith.select %46, %252, %251 : vector<32x128xi1>, vector<32x128xf32>
    %254 = arith.minimumf %250, %253 : vector<32x128xf32>
    %255 = arith.minimumf %246, %254 : vector<32x128xf32>
    %c1_i32_106 = arith.constant 1 : i32
    %256 = tpu.dynamic_rotate %255 by %c1_i32_106 dim 0 : vector<32x128xf32>, i32 -> vector<32x128xf32>
    %cst_107 = arith.constant 0xFF800000 : f32
    %257 = vector.broadcast %cst_107 : f32 to vector<32x128xf32>
    %258 = arith.select %40, %257, %256 : vector<32x128xi1>, vector<32x128xf32>
    %259 = arith.maximumf %258, %255 : vector<32x128xf32>
    %c31_i32_108 = arith.constant 31 : i32
    %260 = tpu.dynamic_rotate %255 by %c31_i32_108 dim 0 : vector<32x128xf32>, i32 -> vector<32x128xf32>
    %cst_109 = arith.constant 0xFF800000 : f32
    %261 = vector.broadcast %cst_109 : f32 to vector<32x128xf32>
    %262 = arith.select %42, %261, %260 : vector<32x128xi1>, vector<32x128xf32>
    %263 = arith.maximumf %259, %262 : vector<32x128xf32>
    %c1_i32_110 = arith.constant 1 : i32
    %264 = tpu.dynamic_rotate %263 by %c1_i32_110 dim 1 : vector<32x128xf32>, i32 -> vector<32x128xf32>
    %cst_111 = arith.constant 0xFF800000 : f32
    %265 = vector.broadcast %cst_111 : f32 to vector<32x128xf32>
    %266 = arith.select %44, %265, %264 : vector<32x128xi1>, vector<32x128xf32>
    %267 = arith.maximumf %266, %263 : vector<32x128xf32>
    %c127_i32_112 = arith.constant 127 : i32
    %268 = tpu.dynamic_rotate %263 by %c127_i32_112 dim 1 : vector<32x128xf32>, i32 -> vector<32x128xf32>
    %cst_113 = arith.constant 0xFF800000 : f32
    %269 = vector.broadcast %cst_113 : f32 to vector<32x128xf32>
    %270 = arith.select %46, %269, %268 : vector<32x128xi1>, vector<32x128xf32>
    %271 = arith.maximumf %267, %270 : vector<32x128xf32>
    %272 = arith.subf %216, %271 : vector<32x128xf32>
    %cst_114 = arith.constant 0.000000e+00 : f32
    %273 = vector.broadcast %cst_114 : f32 to vector<32x128xf32>
    %274 = arith.maximumf %272, %273 : vector<32x128xf32>
    %275 = arith.mulf %238, %274 : vector<32x128xf32>
    %276 = arith.subf %274, %275 : vector<32x128xf32>
    %277 = arith.addf %238, %276 : vector<32x128xf32>
    %278 = vector.extract_strided_slice %4 {offsets = [0, 0], sizes = [16, 128], strides = [1, 1]} : vector<32x128xf32> to vector<16x128xf32>
    %279 = vector.extract_strided_slice %4 {offsets = [16, 0], sizes = [16, 128], strides = [1, 1]} : vector<32x128xf32> to vector<16x128xf32>
    %280 = vector.extract_strided_slice %277 {offsets = [0, 0], sizes = [16, 128], strides = [1, 1]} : vector<32x128xf32> to vector<16x128xf32>
    %281 = vector.extract_strided_slice %277 {offsets = [16, 0], sizes = [16, 128], strides = [1, 1]} : vector<32x128xf32> to vector<16x128xf32>
    %282 = arith.mulf %279, %278 : vector<16x128xf32>
    %cst_115 = arith.constant dense<0.000000e+00> : vector<128xf32>
    %283 = vector.multi_reduction <add>, %282, %cst_115 [0] : vector<16x128xf32> to vector<128xf32>
    %284 = vector.shape_cast %283 : vector<128xf32> to vector<1x128xf32>
    %cst_116 = arith.constant dense<0.000000e+00> : vector<128xf32>
    %285 = vector.multi_reduction <add>, %278, %cst_116 [0] : vector<16x128xf32> to vector<128xf32>
    %286 = vector.shape_cast %285 : vector<128xf32> to vector<1x128xf32>
    %cst_117 = arith.constant dense<0.000000e+00> : vector<128xf32>
    %287 = vector.multi_reduction <add>, %279, %cst_117 [0] : vector<16x128xf32> to vector<128xf32>
    %288 = vector.shape_cast %287 : vector<128xf32> to vector<1x128xf32>
    %289 = arith.mulf %280, %279 : vector<16x128xf32>
    %cst_118 = arith.constant dense<0.000000e+00> : vector<128xf32>
    %290 = vector.multi_reduction <add>, %289, %cst_118 [0] : vector<16x128xf32> to vector<128xf32>
    %291 = vector.shape_cast %290 : vector<128xf32> to vector<1x128xf32>
    %cst_119 = arith.constant dense<0.000000e+00> : vector<128xf32>
    %292 = vector.multi_reduction <add>, %280, %cst_119 [0] : vector<16x128xf32> to vector<128xf32>
    %293 = vector.shape_cast %292 : vector<128xf32> to vector<1x128xf32>
    %cst_120 = arith.constant dense<0.000000e+00> : vector<128xf32>
    %294 = vector.multi_reduction <add>, %281, %cst_120 [0] : vector<16x128xf32> to vector<128xf32>
    %295 = vector.shape_cast %294 : vector<128xf32> to vector<1x128xf32>
    %cst_121 = arith.constant 0.000000e+00 : f32
    %296 = vector.broadcast %cst_121 : f32 to vector<2x128xf32>
    %297 = tpu.concatenate %284, %286, %288, %291, %293, %295, %296 in 0 : vector<1x128xf32>, vector<1x128xf32>, vector<1x128xf32>, vector<1x128xf32>, vector<1x128xf32>, vector<1x128xf32>, vector<2x128xf32> -> vector<8x128xf32>
    %c0_122 = arith.constant 0 : index
    %c0_123 = arith.constant 0 : index
    %c0_124 = arith.constant 0 : index
    %298 = vector.load %arg3[%c0_122, %c0_123, %c0_124] : memref<1x8x128xf32, #tpu.memory_space<vmem>>, vector<1x8x128xf32>
    %299 = vector.shape_cast %298 : vector<1x8x128xf32> to vector<8x128xf32>
    %300 = arith.addf %299, %297 : vector<8x128xf32>
    %c0_125 = arith.constant 0 : index
    %c0_126 = arith.constant 0 : index
    %c0_127 = arith.constant 0 : index
    %301 = vector.load %arg3[%c0_125, %c0_126, %c0_127] : memref<1x8x128xf32, #tpu.memory_space<vmem>>, vector<1x8x128xf32>
    %302 = vector.shape_cast %301 : vector<1x8x128xf32> to vector<8x128xf32>
    %303 = vector.shape_cast %300 : vector<8x128xf32> to vector<1x8x128xf32>
    tpu.vector_store %arg3[%c0_125, %c0_126, %c0_127], %303 {strides = array<i32>} : memref<1x8x128xf32, #tpu.memory_space<vmem>>, vector<1x8x128xf32>,
    return
  }
  func.func @transform_0(%arg0: i32, %arg1: i32) -> (i32, i32, i32) {
    %c1_i32 = arith.constant 1 : i32
    %0 = arith.muli %arg0, %c1_i32 : i32
    %1 = arith.addi %0, %arg1 : i32
    %c0_i32 = arith.constant 0 : i32
    %c0_i32_0 = arith.constant 0 : i32
    %c0_i32_1 = arith.constant 0 : i32
    return %1, %c0_i32, %c0_i32_0 : i32, i32, i32
  }
  func.func @transform_1(%arg0: i32, %arg1: i32) -> (i32, i32, i32) {
    %c0_i32 = arith.constant 0 : i32
    %c0_i32_0 = arith.constant 0 : i32
    %c0_i32_1 = arith.constant 0 : i32
    return %arg0, %c0_i32, %c0_i32_0 : i32, i32, i32
  }
}

</mosaic_0001>

<llo_original>
// kernel: _lambda_.1
$region0: #{_lambda_.1}
  #allocation0 [shape = 'u32[]', space=smem, size = 0x4, offset = 0x4, fixed_abs, tag = 'smem constant byte address 0x4 - core index']
  #allocation1 [shape = 'u32[144,128]{1,0:T(1,128)}', space=vmem, size = 0x12000, scoped, tag = 'internal scratch']
  %s0 = inlined_call_operand.vmem [shape: f32[1,32,128], index: 0, kind: input, shape index: {}]
  %s1 = inlined_call_operand.vmem [shape: f32[1,8,128], index: 1, kind: output, shape index: {}]
  %s2 = sld [smem:[#allocation0]]
  $region18: #{_lambda_.1} parent=0
    _
  %s4 = ssub.s32 1, %s2
  %s5 = scalar_select 0, %s4, %s2
  // Predicated region
  $region2: #{_lambda_.1} parent=0 // pred_check
    _
  $region3: #{_lambda_.1} parent=0 // pred_check_branch
    %7 = sbr.rel (0) target = $region5
  $region4: #{_lambda_.1} parent=0 // pred_region
    %s8 = sadd.s32 0, 0
    %p9 = scmp.lt.s32.totalorder %s8, 0
    %s10 = scalar_select %p9, %s8, 0
    %s11 = smul.addr %s10, 4
    %s12 = smul.addr %s11, 8
    %s13 = scalar_lea.vmem %s0, %s12
    %s14 = sadd.s32 0, 0
  $region5: #{_lambda_.1} parent=0 // pred_fallthru
    _
  %s15 = sadd.s32 0, 0
  %p16 = scmp.lt.s32.totalorder %s15, 0
  %s17 = scalar_select %p16, %s15, 0
  %s18 = smul.addr %s17, 4
  %s19 = smul.addr %s18, 8
  %s20 = scalar_lea.vmem %s0, %s19
  %s21 = sadd.s32 0, 0
  %p22 = scmp.lt.s32.totalorder %s21, 0
  %s23 = scalar_select %p22, %s21, 0
  %s24 = smul.addr %s23, 4
  %s25 = smul.addr %s24, 8
  %s26 = scalar_lea.vmem %s0, %s25
  %s27 = sadd.s32 0, 0
  %p28 = scmp.eq.s32.totalorder 0, 0
  // Predicated region
  $region6: #{_lambda_.1} parent=0 // pred_check
    %p29 = pneg %p28
  $region7: #{_lambda_.1} parent=0 // pred_check_branch
    %31 = sbr.rel (%p29) target = $region9
  $region8: #{_lambda_.1} parent=0 // pred_region
    %32 = vst [vmem:[%s1] sm:$0xff] 0.0
  $region9: #{_lambda_.1} parent=0 // pred_fallthru
    _
  %v33 = vld [vmem:[%s26] sm:$0xff]
  %v34 = vld [vmem:[%s26 + $0x8] sm:$0xff]
  %v35 = vld [vmem:[%s26 + $0x10] sm:$0xff]
  %v36 = vld [vmem:[%s26 + $0x18] sm:$0xff]
  %v37 = vlaneseq
  %v38 = vshrl.u32 %v37, 7
  %v39 = vadd.s32 %v38, 8
  %v40 = vadd.s32 %v38, 16
  %v41 = vadd.s32 %v38, 24
  %vm42 = vcmp.lt.s32.totalorder %v38, 0
  %v43 = vsub.s32 0, %v38
  %v44 = vsel %vm42, %v43, %v38
  %v45 = vshrl.u32 %v44, 4
  %v46 = vand.u32 %v44, 15
  %v47 = vsub.s32 0, %v46
  %v48 = vsel %vm42, %v47, %v46
  %vm49 = vcmp.lt.s32.totalorder %v39, 0
  %v50 = vsub.s32 0, %v39
  %v51 = vsel %vm49, %v50, %v39
  %v52 = vshrl.u32 %v51, 4
  %v53 = vand.u32 %v51, 15
  %v54 = vsub.s32 0, %v53
  %v55 = vsel %vm49, %v54, %v53
  %vm56 = vcmp.lt.s32.totalorder %v40, 0
  %v57 = vsub.s32 0, %v40
  %v58 = vsel %vm56, %v57, %v40
  %v59 = vshrl.u32 %v58, 4
  %v60 = vand.u32 %v58, 15
  %v61 = vsub.s32 0, %v60
  %v62 = vsel %vm56, %v61, %v60
  %vm63 = vcmp.lt.s32.totalorder %v41, 0
  %v64 = vsub.s32 0, %v41
  %v65 = vsel %vm63, %v64, %v41
  %v66 = vshrl.u32 %v65, 4
  %v67 = vand.u32 %v65, 15
  %v68 = vsub.s32 0, %v67
  %v69 = vsel %vm63, %v68, %v67
  %vm70 = vcmp.ne.s32.totalorder %v48, 0
  %vm71 = vcmp.ne.s32.totalorder %v55, 0
  %vm72 = vcmp.ne.s32.totalorder %v62, 0
  %vm73 = vcmp.ne.s32.totalorder %v69, 0
  %vm74 = vcmp.lt.s32.totalorder %v48, 0
  %vm75 = vcmp.lt.s32.totalorder %v55, 0
  %vm76 = vcmp.lt.s32.totalorder %v62, 0
  %vm77 = vcmp.lt.s32.totalorder %v69, 0
  %vm78 = vmand %vm74, %vm70
  %vm79 = vmand %vm75, %vm71
  %vm80 = vmand %vm76, %vm72
  %vm81 = vmand %vm77, %vm73
  %v82 = vadd.s32 %v48, 16
  %v83 = vadd.s32 %v55, 16
  %v84 = vadd.s32 %v62, 16
  %v85 = vadd.s32 %v69, 16
  %v86 = vsel %vm78, %v82, %v48
  %v87 = vsel %vm79, %v83, %v55
  %v88 = vsel %vm80, %v84, %v62
  %v89 = vsel %vm81, %v85, %v69
  %v90 = vlaneseq
  %v91 = vand.u32 %v90, 127
  %vm92 = vcmp.lt.s32.totalorder %v91, 0
  %v93 = vsub.s32 0, %v91
  %v94 = vsel %vm92, %v93, %v91
  %v95 = vshrl.u32 %v94, 4
  %v96 = vand.u32 %v94, 15
  %v97 = vsub.s32 0, %v96
  %v98 = vsel %vm92, %v97, %v96
  %vm99 = vcmp.ne.s32.totalorder %v98, 0
  %vm100 = vcmp.lt.s32.totalorder %v98, 0
  %vm101 = vmand %vm100, %vm99
  %v102 = vadd.s32 %v98, 16
  %v103 = vsel %vm101, %v102, %v98
  %vm104 = vcmp.eq.s32.totalorder %v86, 0
  %vm105 = vcmp.eq.s32.totalorder %v87, 0
  %vm106 = vcmp.eq.s32.totalorder %v88, 0
  %vm107 = vcmp.eq.s32.totalorder %v89, 0
  %vm108 = vcmp.eq.s32.totalorder %v86, 15
  %vm109 = vcmp.eq.s32.totalorder %v87, 15
  %vm110 = vcmp.eq.s32.totalorder %v88, 15
  %vm111 = vcmp.eq.s32.totalorder %v89, 15
  %vm112 = vcmp.eq.s32.totalorder %v103, 0
  %vm113 = vcmp.eq.s32.totalorder %v103, 15
  %v114 = vrot.slane %v33, 7
  %v115 = vrot.slane %v34, 7
  %v116 = vrot.slane %v35, 7
  %v117 = vrot.slane %v36, 7
  %vm118 = vcmp.lt.s32.totalorder %v38, 1
  %v119 = vsel %vm118, %v116, %v117
  %v120 = vsel %vm118, %v115, %v116
  %v121 = vsel %vm118, %v114, %v115
  %v122 = vsel %vm118, %v117, %v114
  %v123 = vsel %vm104, inf, %v122
  %v124 = vsel %vm105, inf, %v121
  %v125 = vsel %vm106, inf, %v120
  %v126 = vsel %vm107, inf, %v119
  %v127 = vmin.f32 %v123, %v33
  %v128 = vmin.f32 %v124, %v34
  %v129 = vmin.f32 %v125, %v35
  %v130 = vmin.f32 %v126, %v36
  %v131 = vrot.slane %v33, 1
  %v132 = vrot.slane %v34, 1
  %v133 = vrot.slane %v35, 1
  %v134 = vrot.slane %v36, 1
  %vm135 = vcmp.lt.s32.totalorder %v38, 7
  %v136 = vsel %vm135, %v133, %v134
  %v137 = vsel %vm135, %v132, %v133
  %v138 = vsel %vm135, %v131, %v132
  %v139 = vsel %vm135, %v134, %v131
  %v140 = vsel %vm108, inf, %v138
  %v141 = vsel %vm109, inf, %v137
  %v142 = vsel %vm110, inf, %v136
  %v143 = vsel %vm111, inf, %v139
  %v144 = vmin.f32 %v127, %v140
  %v145 = vmin.f32 %v128, %v141
  %v146 = vmin.f32 %v129, %v142
  %v147 = vmin.f32 %v130, %v143
  %148 = vrot.lane.b32.xlu0 %v33, 1
  %v149 = vpop.permute.xlu0 %148
  %150 = vrot.lane.b32.xlu0 %v34, 1
  %v151 = vpop.permute.xlu0 %150
  %152 = vrot.lane.b32.xlu0 %v35, 1
  %v153 = vpop.permute.xlu0 %152
  %154 = vrot.lane.b32.xlu0 %v36, 1
  %v155 = vpop.permute.xlu0 %154
  %v156 = vsel %vm112, inf, %v149
  %v157 = vsel %vm112, inf, %v151
  %v158 = vsel %vm112, inf, %v153
  %v159 = vsel %vm112, inf, %v155
  %v160 = vmin.f32 %v156, %v33
  %v161 = vmin.f32 %v157, %v34
  %v162 = vmin.f32 %v158, %v35
  %v163 = vmin.f32 %v159, %v36
  %164 = vrot.lane.b32.xlu0 %v33, 127
  %v165 = vpop.permute.xlu0 %164
  %166 = vrot.lane.b32.xlu0 %v34, 127
  %v167 = vpop.permute.xlu0 %166
  %168 = vrot.lane.b32.xlu0 %v35, 127
  %v169 = vpop.permute.xlu0 %168
  %170 = vrot.lane.b32.xlu0 %v36, 127
  %v171 = vpop.permute.xlu0 %170
  %v172 = vsel %vm113, inf, %v165
  %v173 = vsel %vm113, inf, %v167
  %v174 = vsel %vm113, inf, %v169
  %v175 = vsel %vm113, inf, %v171
  %v176 = vmin.f32 %v160, %v172
  %v177 = vmin.f32 %v161, %v173
  %v178 = vmin.f32 %v162, %v174
  %v179 = vmin.f32 %v163, %v175
  %v180 = vmin.f32 %v144, %v176
  %v181 = vmin.f32 %v145, %v177
  %v182 = vmin.f32 %v146, %v178
  %v183 = vmin.f32 %v147, %v179
  %v184 = vrot.slane %v180, 7
  %v185 = vrot.slane %v181, 7
  %v186 = vrot.slane %v182, 7
  %v187 = vrot.slane %v183, 7
  %v188 = vsel %vm118, %v186, %v187
  %v189 = vsel %vm118, %v185, %v186
  %v190 = vsel %vm118, %v184, %v185
  %v191 = vsel %vm118, %v187, %v184
  %v192 = vsel %vm104, -inf, %v191
  %v193 = vsel %vm105, -inf, %v190
  %v194 = vsel %vm106, -inf, %v189
  %v195 = vsel %vm107, -inf, %v188
  %v196 = vmax.f32 %v192, %v180
  %v197 = vmax.f32 %v193, %v181
  %v198 = vmax.f32 %v194, %v182
  %v199 = vmax.f32 %v195, %v183
  %v200 = vrot.slane %v180, 1
  %v201 = vrot.slane %v181, 1
  %v202 = vrot.slane %v182, 1
  %v203 = vrot.slane %v183, 1
  %v204 = vsel %vm135, %v202, %v203
  %v205 = vsel %vm135, %v201, %v202
  %v206 = vsel %vm135, %v200, %v201
  %v207 = vsel %vm135, %v203, %v200
  %v208 = vsel %vm108, -inf, %v206
  %v209 = vsel %vm109, -inf, %v205
  %v210 = vsel %vm110, -inf, %v204
  %v211 = vsel %vm111, -inf, %v207
  %v212 = vmax.f32 %v196, %v208
  %v213 = vmax.f32 %v197, %v209
  %v214 = vmax.f32 %v198, %v210
  %v215 = vmax.f32 %v199, %v211
  %216 = vrot.lane.b32.xlu0 %v212, 1
  %v217 = vpop.permute.xlu0 %216
  %218 = vrot.lane.b32.xlu0 %v213, 1
  %v219 = vpop.permute.xlu0 %218
  %220 = vrot.lane.b32.xlu0 %v214, 1
  %v221 = vpop.permute.xlu0 %220
  %222 = vrot.lane.b32.xlu0 %v215, 1
  %v223 = vpop.permute.xlu0 %222
  %v224 = vsel %vm112, -inf, %v217
  %v225 = vsel %vm112, -inf, %v219
  %v226 = vsel %vm112, -inf, %v221
  %v227 = vsel %vm112, -inf, %v223
  %v228 = vmax.f32 %v224, %v212
  %v229 = vmax.f32 %v225, %v213
  %v230 = vmax.f32 %v226, %v214
  %v231 = vmax.f32 %v227, %v215
  %232 = vrot.lane.b32.xlu0 %v212, 127
  %v233 = vpop.permute.xlu0 %232
  %234 = vrot.lane.b32.xlu0 %v213, 127
  %v235 = vpop.permute.xlu0 %234
  %236 = vrot.lane.b32.xlu0 %v214, 127
  %v237 = vpop.permute.xlu0 %236
  %238 = vrot.lane.b32.xlu0 %v215, 127
  %v239 = vpop.permute.xlu0 %238
  %v240 = vsel %vm113, -inf, %v233
  %v241 = vsel %vm113, -inf, %v235
  %v242 = vsel %vm113, -inf, %v237
  %v243 = vsel %vm113, -inf, %v239
  %v244 = vmax.f32 %v228, %v240
  %v245 = vmax.f32 %v229, %v241
  %v246 = vmax.f32 %v230, %v242
  %v247 = vmax.f32 %v231, %v243
  %v248 = vsub.f32 %v33, %v244
  %v249 = vsub.f32 %v34, %v245
  %v250 = vsub.f32 %v35, %v246
  %v251 = vsub.f32 %v36, %v247
  %v252 = vmax.f32 %v248, 0.0
  %v253 = vmax.f32 %v249, 0.0
  %v254 = vmax.f32 %v250, 0.0
  %v255 = vmax.f32 %v251, 0.0
  %v256 = vsel %vm104, inf, %v191
  %v257 = vsel %vm105, inf, %v190
  %v258 = vsel %vm106, inf, %v189
  %v259 = vsel %vm107, inf, %v188
  %v260 = vmin.f32 %v256, %v180
  %v261 = vmin.f32 %v257, %v181
  %v262 = vmin.f32 %v258, %v182
  %v263 = vmin.f32 %v259, %v183
  %v264 = vsel %vm108, inf, %v206
  %v265 = vsel %vm109, inf, %v205
  %v266 = vsel %vm110, inf, %v204
  %v267 = vsel %vm111, inf, %v207
  %v268 = vmin.f32 %v260, %v264
  %v269 = vmin.f32 %v261, %v265
  %v270 = vmin.f32 %v262, %v266
  %v271 = vmin.f32 %v263, %v267
  %272 = vrot.lane.b32.xlu0 %v180, 1
  %v273 = vpop.permute.xlu0 %272
  %274 = vrot.lane.b32.xlu0 %v181, 1
  %v275 = vpop.permute.xlu0 %274
  %276 = vrot.lane.b32.xlu0 %v182, 1
  %v277 = vpop.permute.xlu0 %276
  %278 = vrot.lane.b32.xlu0 %v183, 1
  %v279 = vpop.permute.xlu0 %278
  %v280 = vsel %vm112, inf, %v273
  %v281 = vsel %vm112, inf, %v275
  %v282 = vsel %vm112, inf, %v277
  %v283 = vsel %vm112, inf, %v279
  %v284 = vmin.f32 %v280, %v180
  %v285 = vmin.f32 %v281, %v181
  %v286 = vmin.f32 %v282, %v182
  %v287 = vmin.f32 %v283, %v183
  %288 = vrot.lane.b32.xlu0 %v180, 127
  %v289 = vpop.permute.xlu0 %288
  %290 = vrot.lane.b32.xlu0 %v181, 127
  %v291 = vpop.permute.xlu0 %290
  %292 = vrot.lane.b32.xlu0 %v182, 127
  %v293 = vpop.permute.xlu0 %292
  %294 = vrot.lane.b32.xlu0 %v183, 127
  %v295 = vpop.permute.xlu0 %294
  %v296 = vsel %vm113, inf, %v289
  %v297 = vsel %vm113, inf, %v291
  %v298 = vsel %vm113, inf, %v293
  %v299 = vsel %vm113, inf, %v295
  %v300 = vmin.f32 %v284, %v296
  %v301 = vmin.f32 %v285, %v297
  %v302 = vmin.f32 %v286, %v298
  %v303 = vmin.f32 %v287, %v299
  %v304 = vmin.f32 %v268, %v300
  %v305 = vmin.f32 %v269, %v301
  %v306 = vmin.f32 %v270, %v302
  %v307 = vmin.f32 %v271, %v303
  %v308 = vrot.slane %v304, 7
  %v309 = vrot.slane %v305, 7
  %v310 = vrot.slane %v306, 7
  %v311 = vrot.slane %v307, 7
  %v312 = vsel %vm118, %v310, %v311
  %v313 = vsel %vm118, %v309, %v310
  %v314 = vsel %vm118, %v308, %v309
  %v315 = vsel %vm118, %v311, %v308
  %v316 = vsel %vm104, -inf, %v315
  %v317 = vsel %vm105, -inf, %v314
  %v318 = vsel %vm106, -inf, %v313
  %v319 = vsel %vm107, -inf, %v312
  %v320 = vmax.f32 %v316, %v304
  %v321 = vmax.f32 %v317, %v305
  %v322 = vmax.f32 %v318, %v306
  %v323 = vmax.f32 %v319, %v307
  %v324 = vrot.slane %v304, 1
  %v325 = vrot.slane %v305, 1
  %v326 = vrot.slane %v306, 1
  %v327 = vrot.slane %v307, 1
  %v328 = vsel %vm135, %v326, %v327
  %v329 = vsel %vm135, %v325, %v326
  %v330 = vsel %vm135, %v324, %v325
  %v331 = vsel %vm135, %v327, %v324
  %v332 = vsel %vm108, -inf, %v330
  %v333 = vsel %vm109, -inf, %v329
  %v334 = vsel %vm110, -inf, %v328
  %v335 = vsel %vm111, -inf, %v331
  %v336 = vmax.f32 %v320, %v332
  %v337 = vmax.f32 %v321, %v333
  %v338 = vmax.f32 %v322, %v334
  %v339 = vmax.f32 %v323, %v335
  %340 = vrot.lane.b32.xlu0 %v336, 1
  %v341 = vpop.permute.xlu0 %340
  %342 = vrot.lane.b32.xlu0 %v337, 1
  %v343 = vpop.permute.xlu0 %342
  %344 = vrot.lane.b32.xlu0 %v338, 1
  %v345 = vpop.permute.xlu0 %344
  %346 = vrot.lane.b32.xlu0 %v339, 1
  %v347 = vpop.permute.xlu0 %346
  %v348 = vsel %vm112, -inf, %v341
  %v349 = vsel %vm112, -inf, %v343
  %v350 = vsel %vm112, -inf, %v345
  %v351 = vsel %vm112, -inf, %v347
  %v352 = vmax.f32 %v348, %v336
  %v353 = vmax.f32 %v349, %v337
  %v354 = vmax.f32 %v350, %v338
  %v355 = vmax.f32 %v351, %v339
  %356 = vrot.lane.b32.xlu0 %v336, 127
  %v357 = vpop.permute.xlu0 %356
  %358 = vrot.lane.b32.xlu0 %v337, 127
  %v359 = vpop.permute.xlu0 %358
  %360 = vrot.lane.b32.xlu0 %v338, 127
  %v361 = vpop.permute.xlu0 %360
  %362 = vrot.lane.b32.xlu0 %v339, 127
  %v363 = vpop.permute.xlu0 %362
  %v364 = vsel %vm113, -inf, %v357
  %v365 = vsel %vm113, -inf, %v359
  %v366 = vsel %vm113, -inf, %v361
  %v367 = vsel %vm113, -inf, %v363
  %v368 = vmax.f32 %v352, %v364
  %v369 = vmax.f32 %v353, %v365
  %v370 = vmax.f32 %v354, %v366
  %v371 = vmax.f32 %v355, %v367
  %v372 = vsub.f32 %v180, %v368
  %v373 = vsub.f32 %v181, %v369
  %v374 = vsub.f32 %v182, %v370
  %v375 = vsub.f32 %v183, %v371
  %v376 = vmax.f32 %v372, 0.0
  %v377 = vmax.f32 %v373, 0.0
  %v378 = vmax.f32 %v374, 0.0
  %v379 = vmax.f32 %v375, 0.0
  %v380 = vmul.f32 %v252, %v376
  %v381 = vmul.f32 %v253, %v377
  %v382 = vmul.f32 %v254, %v378
  %v383 = vmul.f32 %v255, %v379
  %v384 = vsub.f32 %v376, %v380
  %v385 = vsub.f32 %v377, %v381
  %v386 = vsub.f32 %v378, %v382
  %v387 = vsub.f32 %v379, %v383
  %v388 = vadd.f32 %v252, %v384
  %v389 = vadd.f32 %v253, %v385
  %v390 = vadd.f32 %v254, %v386
  %v391 = vadd.f32 %v255, %v387
  %v392 = vsel %vm104, inf, %v315
  %v393 = vsel %vm105, inf, %v314
  %v394 = vsel %vm106, inf, %v313
  %v395 = vsel %vm107, inf, %v312
  %v396 = vmin.f32 %v392, %v304
  %v397 = vmin.f32 %v393, %v305
  %v398 = vmin.f32 %v394, %v306
  %v399 = vmin.f32 %v395, %v307
  %v400 = vsel %vm108, inf, %v330
  %v401 = vsel %vm109, inf, %v329
  %v402 = vsel %vm110, inf, %v328
  %v403 = vsel %vm111, inf, %v331
  %v404 = vmin.f32 %v396, %v400
  %v405 = vmin.f32 %v397, %v401
  %v406 = vmin.f32 %v398, %v402
  %v407 = vmin.f32 %v399, %v403
  %408 = vrot.lane.b32.xlu0 %v304, 1
  %v409 = vpop.permute.xlu0 %408
  %410 = vrot.lane.b32.xlu0 %v305, 1
  %v411 = vpop.permute.xlu0 %410
  %412 = vrot.lane.b32.xlu0 %v306, 1
  %v413 = vpop.permute.xlu0 %412
  %414 = vrot.lane.b32.xlu0 %v307, 1
  %v415 = vpop.permute.xlu0 %414
  %v416 = vsel %vm112, inf, %v409
  %v417 = vsel %vm112, inf, %v411
  %v418 = vsel %vm112, inf, %v413
  %v419 = vsel %vm112, inf, %v415
  %v420 = vmin.f32 %v416, %v304
  %v421 = vmin.f32 %v417, %v305
  %v422 = vmin.f32 %v418, %v306
  %v423 = vmin.f32 %v419, %v307
  %424 = vrot.lane.b32.xlu0 %v304, 127
  %v425 = vpop.permute.xlu0 %424
  %426 = vrot.lane.b32.xlu0 %v305, 127
  %v427 = vpop.permute.xlu0 %426
  %428 = vrot.lane.b32.xlu0 %v306, 127
  %v429 = vpop.permute.xlu0 %428
  %430 = vrot.lane.b32.xlu0 %v307, 127
  %v431 = vpop.permute.xlu0 %430
  %v432 = vsel %vm113, inf, %v425
  %v433 = vsel %vm113, inf, %v427
  %v434 = vsel %vm113, inf, %v429
  %v435 = vsel %vm113, inf, %v431
  %v436 = vmin.f32 %v420, %v432
  %v437 = vmin.f32 %v421, %v433
  %v438 = vmin.f32 %v422, %v434
  %v439 = vmin.f32 %v423, %v435
  %v440 = vmin.f32 %v404, %v436
  %v441 = vmin.f32 %v405, %v437
  %v442 = vmin.f32 %v406, %v438
  %v443 = vmin.f32 %v407, %v439
  %v444 = vrot.slane %v440, 7
  %v445 = vrot.slane %v441, 7
  %v446 = vrot.slane %v442, 7
  %v447 = vrot.slane %v443, 7
  %v448 = vsel %vm118, %v446, %v447
  %v449 = vsel %vm118, %v445, %v446
  %v450 = vsel %vm118, %v444, %v445
  %v451 = vsel %vm118, %v447, %v444
  %v452 = vsel %vm104, -inf, %v451
  %v453 = vsel %vm105, -inf, %v450
  %v454 = vsel %vm106, -inf, %v449
  %v455 = vsel %vm107, -inf, %v448
  %v456 = vmax.f32 %v452, %v440
  %v457 = vmax.f32 %v453, %v441
  %v458 = vmax.f32 %v454, %v442
  %v459 = vmax.f32 %v455, %v443
  %v460 = vrot.slane %v440, 1
  %v461 = vrot.slane %v441, 1
  %v462 = vrot.slane %v442, 1
  %v463 = vrot.slane %v443, 1
  %v464 = vsel %vm135, %v462, %v463
  %v465 = vsel %vm135, %v461, %v462
  %v466 = vsel %vm135, %v460, %v461
  %v467 = vsel %vm135, %v463, %v460
  %v468 = vsel %vm108, -inf, %v466
  %v469 = vsel %vm109, -inf, %v465
  %v470 = vsel %vm110, -inf, %v464
  %v471 = vsel %vm111, -inf, %v467
  %v472 = vmax.f32 %v456, %v468
  %v473 = vmax.f32 %v457, %v469
  %v474 = vmax.f32 %v458, %v470
  %v475 = vmax.f32 %v459, %v471
  %476 = vrot.lane.b32.xlu0 %v472, 1
  %v477 = vpop.permute.xlu0 %476
  %478 = vrot.lane.b32.xlu0 %v473, 1
  %v479 = vpop.permute.xlu0 %478
  %480 = vrot.lane.b32.xlu0 %v474, 1
  %v481 = vpop.permute.xlu0 %480
  %482 = vrot.lane.b32.xlu0 %v475, 1
  %v483 = vpop.permute.xlu0 %482
  %v484 = vsel %vm112, -inf, %v477
  %v485 = vsel %vm112, -inf, %v479
  %v486 = vsel %vm112, -inf, %v481
  %v487 = vsel %vm112, -inf, %v483
  %v488 = vmax.f32 %v484, %v472
  %v489 = vmax.f32 %v485, %v473
  %v490 = vmax.f32 %v486, %v474
  %v491 = vmax.f32 %v487, %v475
  %492 = vrot.lane.b32.xlu0 %v472, 127
  %v493 = vpop.permute.xlu0 %492
  %494 = vrot.lane.b32.xlu0 %v473, 127
  %v495 = vpop.permute.xlu0 %494
  %496 = vrot.lane.b32.xlu0 %v474, 127
  %v497 = vpop.permute.xlu0 %496
  %498 = vrot.lane.b32.xlu0 %v475, 127
  %v499 = vpop.permute.xlu0 %498
  %v500 = vsel %vm113, -inf, %v493
  %v501 = vsel %vm113, -inf, %v495
  %v502 = vsel %vm113, -inf, %v497
  %v503 = vsel %vm113, -inf, %v499
  %v504 = vmax.f32 %v488, %v500
  %v505 = vmax.f32 %v489, %v501
  %v506 = vmax.f32 %v490, %v502
  %v507 = vmax.f32 %v491, %v503
  %v508 = vsub.f32 %v304, %v504
  %v509 = vsub.f32 %v305, %v505
  %v510 = vsub.f32 %v306, %v506
  %v511 = vsub.f32 %v307, %v507
  %v512 = vmax.f32 %v508, 0.0
  %v513 = vmax.f32 %v509, 0.0
  %v514 = vmax.f32 %v510, 0.0
  %v515 = vmax.f32 %v511, 0.0
  %v516 = vmul.f32 %v388, %v512
  %v517 = vmul.f32 %v389, %v513
  %v518 = vmul.f32 %v390, %v514
  %v519 = vmul.f32 %v391, %v515
  %v520 = vsub.f32 %v512, %v516
  %v521 = vsub.f32 %v513, %v517
  %v522 = vsub.f32 %v514, %v518
  %v523 = vsub.f32 %v515, %v519
  %v524 = vadd.f32 %v388, %v520
  %v525 = vadd.f32 %v389, %v521
  %v526 = vadd.f32 %v390, %v522
  %v527 = vadd.f32 %v391, %v523
  %v528 = vsel %vm104, inf, %v451
  %v529 = vsel %vm105, inf, %v450
  %v530 = vsel %vm106, inf, %v449
  %v531 = vsel %vm107, inf, %v448
  %v532 = vmin.f32 %v528, %v440
  %v533 = vmin.f32 %v529, %v441
  %v534 = vmin.f32 %v530, %v442
  %v535 = vmin.f32 %v531, %v443
  %v536 = vsel %vm108, inf, %v466
  %v537 = vsel %vm109, inf, %v465
  %v538 = vsel %vm110, inf, %v464
  %v539 = vsel %vm111, inf, %v467
  %v540 = vmin.f32 %v532, %v536
  %v541 = vmin.f32 %v533, %v537
  %v542 = vmin.f32 %v534, %v538
  %v543 = vmin.f32 %v535, %v539
  %544 = vrot.lane.b32.xlu0 %v440, 1
  %v545 = vpop.permute.xlu0 %544
  %546 = vrot.lane.b32.xlu0 %v441, 1
  %v547 = vpop.permute.xlu0 %546
  %548 = vrot.lane.b32.xlu0 %v442, 1
  %v549 = vpop.permute.xlu0 %548
  %550 = vrot.lane.b32.xlu0 %v443, 1
  %v551 = vpop.permute.xlu0 %550
  %v552 = vsel %vm112, inf, %v545
  %v553 = vsel %vm112, inf, %v547
  %v554 = vsel %vm112, inf, %v549
  %v555 = vsel %vm112, inf, %v551
  %v556 = vmin.f32 %v552, %v440
  %v557 = vmin.f32 %v553, %v441
  %v558 = vmin.f32 %v554, %v442
  %v559 = vmin.f32 %v555, %v443
  %560 = vrot.lane.b32.xlu0 %v440, 127
  %v561 = vpop.permute.xlu0 %560
  %562 = vrot.lane.b32.xlu0 %v441, 127
  %v563 = vpop.permute.xlu0 %562
  %564 = vrot.lane.b32.xlu0 %v442, 127
  %v565 = vpop.permute.xlu0 %564
  %566 = vrot.lane.b32.xlu0 %v443, 127
  %v567 = vpop.permute.xlu0 %566
  %v568 = vsel %vm113, inf, %v561
  %v569 = vsel %vm113, inf, %v563
  %v570 = vsel %vm113, inf, %v565
  %v571 = vsel %vm113, inf, %v567
  %v572 = vmin.f32 %v556, %v568
  %v573 = vmin.f32 %v557, %v569
  %v574 = vmin.f32 %v558, %v570
  %v575 = vmin.f32 %v559, %v571
  %v576 = vmin.f32 %v540, %v572
  %v577 = vmin.f32 %v541, %v573
  %v578 = vmin.f32 %v542, %v574
  %v579 = vmin.f32 %v543, %v575
  %v580 = vrot.slane %v576, 7
  %v581 = vrot.slane %v577, 7
  %v582 = vrot.slane %v578, 7
  %v583 = vrot.slane %v579, 7
  %v584 = vsel %vm118, %v582, %v583
  %v585 = vsel %vm118, %v581, %v582
  %v586 = vsel %vm118, %v580, %v581
  %v587 = vsel %vm118, %v583, %v580
  %v588 = vsel %vm104, -inf, %v587
  %v589 = vsel %vm105, -inf, %v586
  %v590 = vsel %vm106, -inf, %v585
  %v591 = vsel %vm107, -inf, %v584
  %v592 = vmax.f32 %v588, %v576
  %v593 = vmax.f32 %v589, %v577
  %v594 = vmax.f32 %v590, %v578
  %v595 = vmax.f32 %v591, %v579
  %v596 = vrot.slane %v576, 1
  %v597 = vrot.slane %v577, 1
  %v598 = vrot.slane %v578, 1
  %v599 = vrot.slane %v579, 1
  %v600 = vsel %vm135, %v598, %v599
  %v601 = vsel %vm135, %v597, %v598
  %v602 = vsel %vm135, %v596, %v597
  %v603 = vsel %vm135, %v599, %v596
  %v604 = vsel %vm108, -inf, %v602
  %v605 = vsel %vm109, -inf, %v601
  %v606 = vsel %vm110, -inf, %v600
  %v607 = vsel %vm111, -inf, %v603
  %v608 = vmax.f32 %v592, %v604
  %v609 = vmax.f32 %v593, %v605
  %v610 = vmax.f32 %v594, %v606
  %v611 = vmax.f32 %v595, %v607
  %612 = vrot.lane.b32.xlu0 %v608, 1
  %v613 = vpop.permute.xlu0 %612
  %614 = vrot.lane.b32.xlu0 %v609, 1
  %v615 = vpop.permute.xlu0 %614
  %616 = vrot.lane.b32.xlu0 %v610, 1
  %v617 = vpop.permute.xlu0 %616
  %618 = vrot.lane.b32.xlu0 %v611, 1
  %v619 = vpop.permute.xlu0 %618
  %v620 = vsel %vm112, -inf, %v613
  %v621 = vsel %vm112, -inf, %v615
  %v622 = vsel %vm112, -inf, %v617
  %v623 = vsel %vm112, -inf, %v619
  %v624 = vmax.f32 %v620, %v608
  %v625 = vmax.f32 %v621, %v609
  %v626 = vmax.f32 %v622, %v610
  %v627 = vmax.f32 %v623, %v611
  %628 = vrot.lane.b32.xlu0 %v608, 127
  %v629 = vpop.permute.xlu0 %628
  %630 = vrot.lane.b32.xlu0 %v609, 127
  %v631 = vpop.permute.xlu0 %630
  %632 = vrot.lane.b32.xlu0 %v610, 127
  %v633 = vpop.permute.xlu0 %632
  %634 = vrot.lane.b32.xlu0 %v611, 127
  %v635 = vpop.permute.xlu0 %634
  %v636 = vsel %vm113, -inf, %v629
  %v637 = vsel %vm113, -inf, %v631
  %v638 = vsel %vm113, -inf, %v633
  %v639 = vsel %vm113, -inf, %v635
  %v640 = vmax.f32 %v624, %v636
  %v641 = vmax.f32 %v625, %v637
  %v642 = vmax.f32 %v626, %v638
  %v643 = vmax.f32 %v627, %v639
  %v644 = vsub.f32 %v440, %v640
  %v645 = vsub.f32 %v441, %v641
  %v646 = vsub.f32 %v442, %v642
  %v647 = vsub.f32 %v443, %v643
  %v648 = vmax.f32 %v644, 0.0
  %v649 = vmax.f32 %v645, 0.0
  %v650 = vmax.f32 %v646, 0.0
  %v651 = vmax.f32 %v647, 0.0
  %v652 = vmul.f32 %v524, %v648
  %v653 = vmul.f32 %v525, %v649
  %v654 = vmul.f32 %v526, %v650
  %v655 = vmul.f32 %v527, %v651
  %v656 = vsub.f32 %v648, %v652
  %v657 = vsub.f32 %v649, %v653
  %v658 = vsub.f32 %v650, %v654
  %v659 = vsub.f32 %v651, %v655
  %v660 = vadd.f32 %v524, %v656
  %v661 = vadd.f32 %v525, %v657
  %v662 = vadd.f32 %v526, %v658
  %v663 = vadd.f32 %v527, %v659
  %v664 = vsel %vm104, inf, %v587
  %v665 = vsel %vm105, inf, %v586
  %v666 = vsel %vm106, inf, %v585
  %v667 = vsel %vm107, inf, %v584
  %v668 = vmin.f32 %v664, %v576
  %v669 = vmin.f32 %v665, %v577
  %v670 = vmin.f32 %v666, %v578
  %v671 = vmin.f32 %v667, %v579
  %v672 = vsel %vm108, inf, %v602
  %v673 = vsel %vm109, inf, %v601
  %v674 = vsel %vm110, inf, %v600
  %v675 = vsel %vm111, inf, %v603
  %v676 = vmin.f32 %v668, %v672
  %v677 = vmin.f32 %v669, %v673
  %v678 = vmin.f32 %v670, %v674
  %v679 = vmin.f32 %v671, %v675
  %680 = vrot.lane.b32.xlu0 %v576, 1
  %v681 = vpop.permute.xlu0 %680
  %682 = vrot.lane.b32.xlu0 %v577, 1
  %v683 = vpop.permute.xlu0 %682
  %684 = vrot.lane.b32.xlu0 %v578, 1
  %v685 = vpop.permute.xlu0 %684
  %686 = vrot.lane.b32.xlu0 %v579, 1
  %v687 = vpop.permute.xlu0 %686
  %v688 = vsel %vm112, inf, %v681
  %v689 = vsel %vm112, inf, %v683
  %v690 = vsel %vm112, inf, %v685
  %v691 = vsel %vm112, inf, %v687
  %v692 = vmin.f32 %v688, %v576
  %v693 = vmin.f32 %v689, %v577
  %v694 = vmin.f32 %v690, %v578
  %v695 = vmin.f32 %v691, %v579
  %696 = vrot.lane.b32.xlu0 %v576, 127
  %v697 = vpop.permute.xlu0 %696
  %698 = vrot.lane.b32.xlu0 %v577, 127
  %v699 = vpop.permute.xlu0 %698
  %700 = vrot.lane.b32.xlu0 %v578, 127
  %v701 = vpop.permute.xlu0 %700
  %702 = vrot.lane.b32.xlu0 %v579, 127
  %v703 = vpop.permute.xlu0 %702
  %v704 = vsel %vm113, inf, %v697
  %v705 = vsel %vm113, inf, %v699
  %v706 = vsel %vm113, inf, %v701
  %v707 = vsel %vm113, inf, %v703
  %v708 = vmin.f32 %v692, %v704
  %v709 = vmin.f32 %v693, %v705
  %v710 = vmin.f32 %v694, %v706
  %v711 = vmin.f32 %v695, %v707
  %v712 = vmin.f32 %v676, %v708
  %v713 = vmin.f32 %v677, %v709
  %v714 = vmin.f32 %v678, %v710
  %v715 = vmin.f32 %v679, %v711
  %v716 = vrot.slane %v712, 7
  %v717 = vrot.slane %v713, 7
  %v718 = vrot.slane %v714, 7
  %v719 = vrot.slane %v715, 7
  %v720 = vsel %vm118, %v718, %v719
  %v721 = vsel %vm118, %v717, %v718
  %v722 = vsel %vm118, %v716, %v717
  %v723 = vsel %vm118, %v719, %v716
  %v724 = vsel %vm104, -inf, %v723
  %v725 = vsel %vm105, -inf, %v722
  %v726 = vsel %vm106, -inf, %v721
  %v727 = vsel %vm107, -inf, %v720
  %v728 = vmax.f32 %v724, %v712
  %v729 = vmax.f32 %v725, %v713
  %v730 = vmax.f32 %v726, %v714
  %v731 = vmax.f32 %v727, %v715
  %v732 = vrot.slane %v712, 1
  %v733 = vrot.slane %v713, 1
  %v734 = vrot.slane %v714, 1
  %v735 = vrot.slane %v715, 1
  %v736 = vsel %vm135, %v734, %v735
  %v737 = vsel %vm135, %v733, %v734
  %v738 = vsel %vm135, %v732, %v733
  %v739 = vsel %vm135, %v735, %v732
  %v740 = vsel %vm108, -inf, %v738
  %v741 = vsel %vm109, -inf, %v737
  %v742 = vsel %vm110, -inf, %v736
  %v743 = vsel %vm111, -inf, %v739
  %v744 = vmax.f32 %v728, %v740
  %v745 = vmax.f32 %v729, %v741
  %v746 = vmax.f32 %v730, %v742
  %v747 = vmax.f32 %v731, %v743
  %748 = vrot.lane.b32.xlu0 %v744, 1
  %v749 = vpop.permute.xlu0 %748
  %750 = vrot.lane.b32.xlu0 %v745, 1
  %v751 = vpop.permute.xlu0 %750
  %752 = vrot.lane.b32.xlu0 %v746, 1
  %v753 = vpop.permute.xlu0 %752
  %754 = vrot.lane.b32.xlu0 %v747, 1
  %v755 = vpop.permute.xlu0 %754
  %v756 = vsel %vm112, -inf, %v749
  %v757 = vsel %vm112, -inf, %v751
  %v758 = vsel %vm112, -inf, %v753
  %v759 = vsel %vm112, -inf, %v755
  %v760 = vmax.f32 %v756, %v744
  %v761 = vmax.f32 %v757, %v745
  %v762 = vmax.f32 %v758, %v746
  %v763 = vmax.f32 %v759, %v747
  %764 = vrot.lane.b32.xlu0 %v744, 127
  %v765 = vpop.permute.xlu0 %764
  %766 = vrot.lane.b32.xlu0 %v745, 127
  %v767 = vpop.permute.xlu0 %766
  %768 = vrot.lane.b32.xlu0 %v746, 127
  %v769 = vpop.permute.xlu0 %768
  %770 = vrot.lane.b32.xlu0 %v747, 127
  %v771 = vpop.permute.xlu0 %770
  %v772 = vsel %vm113, -inf, %v765
  %v773 = vsel %vm113, -inf, %v767
  %v774 = vsel %vm113, -inf, %v769
  %v775 = vsel %vm113, -inf, %v771
  %v776 = vmax.f32 %v760, %v772
  %v777 = vmax.f32 %v761, %v773
  %v778 = vmax.f32 %v762, %v774
  %v779 = vmax.f32 %v763, %v775
  %v780 = vsub.f32 %v576, %v776
  %v781 = vsub.f32 %v577, %v777
  %v782 = vsub.f32 %v578, %v778
  %v783 = vsub.f32 %v579, %v779
  %v784 = vmax.f32 %v780, 0.0
  %v785 = vmax.f32 %v781, 0.0
  %v786 = vmax.f32 %v782, 0.0
  %v787 = vmax.f32 %v783, 0.0
  %v788 = vmul.f32 %v660, %v784
  %v789 = vmul.f32 %v661, %v785
  %v790 = vmul.f32 %v662, %v786
  %v791 = vmul.f32 %v663, %v787
  %v792 = vsub.f32 %v784, %v788
  %v793 = vsub.f32 %v785, %v789
  %v794 = vsub.f32 %v786, %v790
  %v795 = vsub.f32 %v787, %v791
  %v796 = vadd.f32 %v660, %v792
  %v797 = vadd.f32 %v661, %v793
  %v798 = vadd.f32 %v662, %v794
  %v799 = vadd.f32 %v663, %v795
  %v800 = vsel %vm104, inf, %v723
  %v801 = vsel %vm105, inf, %v722
  %v802 = vsel %vm106, inf, %v721
  %v803 = vsel %vm107, inf, %v720
  %v804 = vmin.f32 %v800, %v712
  %v805 = vmin.f32 %v801, %v713
  %v806 = vmin.f32 %v802, %v714
  %v807 = vmin.f32 %v803, %v715
  %v808 = vsel %vm108, inf, %v738
  %v809 = vsel %vm109, inf, %v737
  %v810 = vsel %vm110, inf, %v736
  %v811 = vsel %vm111, inf, %v739
  %v812 = vmin.f32 %v804, %v808
  %v813 = vmin.f32 %v805, %v809
  %v814 = vmin.f32 %v806, %v810
  %v815 = vmin.f32 %v807, %v811
  %816 = vrot.lane.b32.xlu0 %v712, 1
  %v817 = vpop.permute.xlu0 %816
  %818 = vrot.lane.b32.xlu0 %v713, 1
  %v819 = vpop.permute.xlu0 %818
  %820 = vrot.lane.b32.xlu0 %v714, 1
  %v821 = vpop.permute.xlu0 %820
  %822 = vrot.lane.b32.xlu0 %v715, 1
  %v823 = vpop.permute.xlu0 %822
  %v824 = vsel %vm112, inf, %v817
  %v825 = vsel %vm112, inf, %v819
  %v826 = vsel %vm112, inf, %v821
  %v827 = vsel %vm112, inf, %v823
  %v828 = vmin.f32 %v824, %v712
  %v829 = vmin.f32 %v825, %v713
  %v830 = vmin.f32 %v826, %v714
  %v831 = vmin.f32 %v827, %v715
  %832 = vrot.lane.b32.xlu0 %v712, 127
  %v833 = vpop.permute.xlu0 %832
  %834 = vrot.lane.b32.xlu0 %v713, 127
  %v835 = vpop.permute.xlu0 %834
  %836 = vrot.lane.b32.xlu0 %v714, 127
  %v837 = vpop.permute.xlu0 %836
  %838 = vrot.lane.b32.xlu0 %v715, 127
  %v839 = vpop.permute.xlu0 %838
  %v840 = vsel %vm113, inf, %v833
  %v841 = vsel %vm113, inf, %v835
  %v842 = vsel %vm113, inf, %v837
  %v843 = vsel %vm113, inf, %v839
  %v844 = vmin.f32 %v828, %v840
  %v845 = vmin.f32 %v829, %v841
  %v846 = vmin.f32 %v830, %v842
  %v847 = vmin.f32 %v831, %v843
  %v848 = vmin.f32 %v812, %v844
  %v849 = vmin.f32 %v813, %v845
  %v850 = vmin.f32 %v814, %v846
  %v851 = vmin.f32 %v815, %v847
  %v852 = vrot.slane %v848, 7
  %v853 = vrot.slane %v849, 7
  %v854 = vrot.slane %v850, 7
  %v855 = vrot.slane %v851, 7
  %v856 = vsel %vm118, %v854, %v855
  %v857 = vsel %vm118, %v853, %v854
  %v858 = vsel %vm118, %v852, %v853
  %v859 = vsel %vm118, %v855, %v852
  %v860 = vsel %vm104, -inf, %v859
  %v861 = vsel %vm105, -inf, %v858
  %v862 = vsel %vm106, -inf, %v857
  %v863 = vsel %vm107, -inf, %v856
  %v864 = vmax.f32 %v860, %v848
  %v865 = vmax.f32 %v861, %v849
  %v866 = vmax.f32 %v862, %v850
  %v867 = vmax.f32 %v863, %v851
  %v868 = vrot.slane %v848, 1
  %v869 = vrot.slane %v849, 1
  %v870 = vrot.slane %v850, 1
  %v871 = vrot.slane %v851, 1
  %v872 = vsel %vm135, %v870, %v871
  %v873 = vsel %vm135, %v869, %v870
  %v874 = vsel %vm135, %v868, %v869
  %v875 = vsel %vm135, %v871, %v868
  %v876 = vsel %vm108, -inf, %v874
  %v877 = vsel %vm109, -inf, %v873
  %v878 = vsel %vm110, -inf, %v872
  %v879 = vsel %vm111, -inf, %v875
  %v880 = vmax.f32 %v864, %v876
  %v881 = vmax.f32 %v865, %v877
  %v882 = vmax.f32 %v866, %v878
  %v883 = vmax.f32 %v867, %v879
  %884 = vrot.lane.b32.xlu0 %v880, 1
  %v885 = vpop.permute.xlu0 %884
  %886 = vrot.lane.b32.xlu0 %v881, 1
  %v887 = vpop.permute.xlu0 %886
  %888 = vrot.lane.b32.xlu0 %v882, 1
  %v889 = vpop.permute.xlu0 %888
  %890 = vrot.lane.b32.xlu0 %v883, 1
  %v891 = vpop.permute.xlu0 %890
  %v892 = vsel %vm112, -inf, %v885
  %v893 = vsel %vm112, -inf, %v887
  %v894 = vsel %vm112, -inf, %v889
  %v895 = vsel %vm112, -inf, %v891
  %v896 = vmax.f32 %v892, %v880
  %v897 = vmax.f32 %v893, %v881
  %v898 = vmax.f32 %v894, %v882
  %v899 = vmax.f32 %v895, %v883
  %900 = vrot.lane.b32.xlu0 %v880, 127
  %v901 = vpop.permute.xlu0 %900
  %902 = vrot.lane.b32.xlu0 %v881, 127
  %v903 = vpop.permute.xlu0 %902
  %904 = vrot.lane.b32.xlu0 %v882, 127
  %v905 = vpop.permute.xlu0 %904
  %906 = vrot.lane.b32.xlu0 %v883, 127
  %v907 = vpop.permute.xlu0 %906
  %v908 = vsel %vm113, -inf, %v901
  %v909 = vsel %vm113, -inf, %v903
  %v910 = vsel %vm113, -inf, %v905
  %v911 = vsel %vm113, -inf, %v907
  %v912 = vmax.f32 %v896, %v908
  %v913 = vmax.f32 %v897, %v909
  %v914 = vmax.f32 %v898, %v910
  %v915 = vmax.f32 %v899, %v911
  %v916 = vsub.f32 %v712, %v912
  %v917 = vsub.f32 %v713, %v913
  %v918 = vsub.f32 %v714, %v914
  %v919 = vsub.f32 %v715, %v915
  %v920 = vmax.f32 %v916, 0.0
  %v921 = vmax.f32 %v917, 0.0
  %v922 = vmax.f32 %v918, 0.0
  %v923 = vmax.f32 %v919, 0.0
  %v924 = vmul.f32 %v796, %v920
  %v925 = vmul.f32 %v797, %v921
  %v926 = vmul.f32 %v798, %v922
  %v927 = vmul.f32 %v799, %v923
  %v928 = vsub.f32 %v920, %v924
  %v929 = vsub.f32 %v921, %v925
  %v930 = vsub.f32 %v922, %v926
  %v931 = vsub.f32 %v923, %v927
  %v932 = vadd.f32 %v796, %v928
  %v933 = vadd.f32 %v797, %v929
  %v934 = vadd.f32 %v798, %v930
  %v935 = vadd.f32 %v799, %v931
  %v936 = vmul.f32 %v35, %v33
  %v937 = vmul.f32 %v36, %v34
  %v938 = vadd.f32 %v936, %v937
  %v939 = vrot.slane %v938, 4
  %v940 = vadd.f32 %v938, %v939
  %v941 = vrot.slane %v940, 2
  %v942 = vadd.f32 %v940, %v941
  %v943 = vrot.slane %v942, 1
  %v944 = vadd.f32 %v942, %v943
  %v945 = vadd.f32 %v33, %v34
  %v946 = vrot.slane %v945, 4
  %v947 = vadd.f32 %v945, %v946
  %v948 = vrot.slane %v947, 2
  %v949 = vadd.f32 %v947, %v948
  %v950 = vrot.slane %v949, 1
  %v951 = vadd.f32 %v949, %v950
  %v952 = vadd.f32 %v35, %v36
  %v953 = vrot.slane %v952, 4
  %v954 = vadd.f32 %v952, %v953
  %v955 = vrot.slane %v954, 2
  %v956 = vadd.f32 %v954, %v955
  %v957 = vrot.slane %v956, 1
  %v958 = vadd.f32 %v956, %v957
  %v959 = vmul.f32 %v932, %v35
  %v960 = vmul.f32 %v933, %v36
  %v961 = vadd.f32 %v959, %v960
  %v962 = vrot.slane %v961, 4
  %v963 = vadd.f32 %v961, %v962
  %v964 = vrot.slane %v963, 2
  %v965 = vadd.f32 %v963, %v964
  %v966 = vrot.slane %v965, 1
  %v967 = vadd.f32 %v965, %v966
  %v968 = vadd.f32 %v932, %v933
  %v969 = vrot.slane %v968, 4
  %v970 = vadd.f32 %v968, %v969
  %v971 = vrot.slane %v970, 2
  %v972 = vadd.f32 %v970, %v971
  %v973 = vrot.slane %v972, 1
  %v974 = vadd.f32 %v972, %v973
  %v975 = vadd.f32 %v934, %v935
  %v976 = vrot.slane %v975, 4
  %v977 = vadd.f32 %v975, %v976
  %v978 = vrot.slane %v977, 2
  %v979 = vadd.f32 %v977, %v978
  %v980 = vrot.slane %v979, 1
  %v981 = vadd.f32 %v979, %v980
  %vm982 = vcmask 1040384
  %v983 = vsel %vm982, %v944, %v951
  %vm984 = vcmask 1041408
  %v985 = vsel %vm984, %v983, %v958
  %vm986 = vcmask 1042432
  %v987 = vsel %vm986, %v985, %v967
  %vm988 = vcmask 1043456
  %v989 = vsel %vm988, %v987, %v974
  %vm990 = vcmask 1044480
  %v991 = vsel %vm990, %v989, %v981
  %vm992 = vcmask 1045504
  %v993 = vsel %vm992, %v991, 0.0
  %v994 = vld [vmem:[%s1] sm:$0xff]
  %v995 = vadd.f32 %v994, %v993
  %996 = vst [vmem:[%s1] sm:$0xff] %v995
  // Predicated region
  $region10: #{_lambda_.1} parent=0 // pred_check
    _
  $region11: #{_lambda_.1} parent=0 // pred_check_branch
    %998 = sbr.rel (0) target = $region13
  $region12: #{_lambda_.1} parent=0 // pred_region
    _
  $region13: #{_lambda_.1} parent=0 // pred_fallthru
    _
  // Predicated region
  $region14: #{_lambda_.1} parent=0 // pred_check
    _
  $region15: #{_lambda_.1} parent=0 // pred_check_branch
    %1000 = sbr.rel (0) target = $region17
  $region16: #{_lambda_.1} parent=0 // pred_region
    _
  $region17: #{_lambda_.1} parent=0 // pred_fallthru
    _

</llo_original>
